<compile_context>
chip_gen: v7x
topology: tpu7x:2x2x1
jax: 0.10.0
libtpu: 0.0.40
codegen_flags: <defaults>
</compile_context>

<pallas_src>
import jax
import jax.numpy as jnp
from jax.experimental import pallas as pl
from jax.experimental.pallas import tpu as pltpu


def _sigmoid_tanh(x):
    # sigma(x) = 0.5 * (1 + tanh(x / 2)) -- exact, single EUP op per element.
    return 0.5 * (jnp.tanh(0.5 * x) + 1.0)


def lstm_label_predictor_kernel(
    x2d_ref,      # (T*Bp, I)    bf16   rows ordered (t, b) -> t*Bp + b
    w_ih_t_ref,   # (I, 4*Hp)    bf16   (= W_ih.T, gates reordered i,f,o,g, padded)
    w_hh_t_ref,   # (Hp, 4*Hp)   bf16   (= W_hh.T, reordered + padded)
    b_ref,        # (1, 4*Hp)    f32    (= b_ih + b_hh, reordered + padded)
    w_fc_t_ref,   # (Hp, Op)     bf16   (= W_fc.T, padded)
    b_fc_ref,     # (1, Op)      f32    (padded)
    out_ref,      # (Bp, Op)     f32
    gx_ref,       # (T*Bp, 4*Hp) f32    VMEM scratch for the input projection
):
    Hp = w_hh_t_ref.shape[0]
    Bp = out_ref.shape[0]
    T = x2d_ref.shape[0] // Bp

    w_hh_t = w_hh_t_ref[...]

    # Hoisted input projection for all timesteps + fused bias: ONE lane-dense
    # matmul, result staged in VMEM so the recurrence only reloads 4 vregs
    # per step (bounds vreg live ranges across the unrolled loop).
    gx_ref[...] = (
        jnp.dot(x2d_ref[...], w_ih_t_ref[...],
                preferred_element_type=jnp.float32)
        + b_ref[...]
    )

    h = jnp.zeros((Bp, Hp), jnp.float32)
    c = jnp.zeros((Bp, Hp), jnp.float32)

    # Fully unrolled recurrence (T is static); only the serial h @ W_hh
    # dependency plus the gate nonlinearities remain per step.  All slices
    # are static and (8, 128)-aligned.  Gate order is (i, f, o, g).
    for t in range(T):
        gx = gx_ref[t * Bp:(t + 1) * Bp, :]                       # (Bp, 4*Hp)
        gates = gx + jnp.dot(h.astype(jnp.bfloat16), w_hh_t,
                             preferred_element_type=jnp.float32)
        # One contiguous sigmoid over (i, f, o), one tanh over g.
        sig = _sigmoid_tanh(gates[:, :3 * Hp])
        i_g = sig[:, 0 * Hp:1 * Hp]
        f_g = sig[:, 1 * Hp:2 * Hp]
        o_g = sig[:, 2 * Hp:3 * Hp]
        g_g = jnp.tanh(gates[:, 3 * Hp:4 * Hp])
        c = f_g * c + i_g * g_g
        h = o_g * jnp.tanh(c)

    logits = (
        jnp.dot(h.astype(jnp.bfloat16), w_fc_t_ref[...],
                preferred_element_type=jnp.float32)
        + b_fc_ref[...]
    )
    out_ref[...] = _sigmoid_tanh(logits).astype(out_ref.dtype)


def label_predictor_lstm(x, params):
    """x: (B, T, input_size) f32 -> (B, output_size) f32."""
    w_ih, w_hh, b_ih, b_hh, w_fc, b_fc = (
        params["w_ih"], params["w_hh"], params["b_ih"],
        params["b_hh"], params["w_fc"], params["b_fc"],
    )
    B, T, I = x.shape
    H = w_hh.shape[1]
    O = w_fc.shape[0]
    Hp = 128                       # pad each gate block / hidden state to one vreg
    Op = 128                       # lane-dense output block
    Bp = ((B + 7) // 8) * 8        # pad batch to full sublane count (8)

    # PyTorch gate order is (i, f, g, o); reorder to (i, f, o, g) so the
    # three sigmoids are contiguous in the kernel.
    GATE_ORDER = (0, 1, 3, 2)

    def pad_reorder_gate_cols(w_t):
        # (K, 4H) -> (K, 4*Hp): reorder gate blocks and pad each from H to Hp.
        K = w_t.shape[0]
        w4 = w_t.reshape(K, 4, H)[:, GATE_ORDER, :]
        return jnp.pad(w4, ((0, 0), (0, 0), (0, Hp - H))).reshape(K, 4 * Hp)

    # Glue: pre-transpose weights, fuse biases, reorder/pad gate + output lanes.
    w_ih_t = pad_reorder_gate_cols(jnp.asarray(w_ih.T, jnp.float32))     # (I, 4Hp)
    w_hh_t = pad_reorder_gate_cols(jnp.asarray(w_hh.T, jnp.float32))     # (H, 4Hp)
    w_hh_t = jnp.pad(w_hh_t, ((0, Hp - H), (0, 0)))                      # (Hp, 4Hp)
    b = pad_reorder_gate_cols(
        jnp.asarray((b_ih + b_hh)[None, :], jnp.float32))                # (1, 4Hp)
    w_fc_t = jnp.pad(jnp.asarray(w_fc.T, jnp.float32),
                     ((0, Hp - H), (0, Op - O)))                         # (Hp, Op)
    b_fc2 = jnp.pad(jnp.asarray(b_fc[None, :], jnp.float32),
                    ((0, 0), (0, Op - O)))                               # (1, Op)

    # (B, T, I) -> pad batch to Bp -> (T, Bp, I) -> (T*Bp, I).
    # Timestep t lives in rows [t*Bp, (t+1)*Bp): sublane-aligned slices.
    x_p = jnp.pad(x.astype(jnp.float32), ((0, Bp - B), (0, 0), (0, 0)))
    x2d = jnp.transpose(x_p, (1, 0, 2)).reshape(T * Bp, I)

    # bf16 MXU inputs; accumulation stays f32 inside the kernel.
    x2d = x2d.astype(jnp.bfloat16)
    w_ih_t = w_ih_t.astype(jnp.bfloat16)
    w_hh_t = w_hh_t.astype(jnp.bfloat16)
    w_fc_t = w_fc_t.astype(jnp.bfloat16)

    vmem = pl.BlockSpec(memory_space=pltpu.MemorySpace.VMEM)
    out_padded = pl.pallas_call(
        lstm_label_predictor_kernel,
        out_shape=jax.ShapeDtypeStruct((Bp, Op), jnp.float32),
        in_specs=[vmem] * 6,
        out_specs=vmem,
        scratch_shapes=[pltpu.VMEM((T * Bp, 4 * Hp), jnp.float32)],
    )(x2d, w_ih_t, w_hh_t, b, w_fc_t, b_fc2)
    return out_padded[:B, :O]


def reference_forward(x, params):
    """Pure-JAX f32 reference with PyTorch nn.LSTM semantics."""
    w_ih, w_hh, b_ih, b_hh, w_fc, b_fc = (
        params["w_ih"], params["w_hh"], params["b_ih"],
        params["b_hh"], params["w_fc"], params["b_fc"],
    )
    B, T, _ = x.shape
    H = w_hh.shape[1]
    h = jnp.zeros((B, H), jnp.float32)
    c = jnp.zeros((B, H), jnp.float32)
    for t in range(T):
        gates = x[:, t, :] @ w_ih.T + b_ih + h @ w_hh.T + b_hh
        i_g = jax.nn.sigmoid(gates[:, 0 * H:1 * H])
        f_g = jax.nn.sigmoid(gates[:, 1 * H:2 * H])
        g_g = jnp.tanh(gates[:, 2 * H:3 * H])
        o_g = jax.nn.sigmoid(gates[:, 3 * H:4 * H])
        c = f_g * c + i_g * g_g
        h = o_g * jnp.tanh(c)
    return jax.nn.sigmoid(h @ w_fc.T + b_fc)


if __name__ == "__main__":
    input_size, hidden_size, output_size = 11, 64, 11
    batch, seq = 2, 8

    key = jax.random.PRNGKey(0)
    k_x, k1, k2, k3, k4, k5, k6 = jax.random.split(key, 7)
    bound = 1.0 / jnp.sqrt(hidden_size)  # PyTorch default uniform init range

    params = {
        "w_ih": jax.random.uniform(k1, (4 * hidden_size, input_size),
                                   jnp.float32, -bound, bound),
        "w_hh": jax.random.uniform(k2, (4 * hidden_size, hidden_size),
                                   jnp.float32, -bound, bound),
        "b_ih": jax.random.uniform(k3, (4 * hidden_size,),
                                   jnp.float32, -bound, bound),
        "b_hh": jax.random.uniform(k4, (4 * hidden_size,),
                                   jnp.float32, -bound, bound),
        "w_fc": jax.random.uniform(k5, (output_size, hidden_size),
                                   jnp.float32, -bound, bound),
        "b_fc": jax.random.uniform(k6, (output_size,),
                                   jnp.float32, -bound, bound),
    }

    x = jax.random.normal(k_x, (batch, seq, input_size), jnp.float32)

    out = label_predictor_lstm(x, params)
    out = jax.block_until_ready(out)

    ref = reference_forward(x, params)
    assert out.shape == (batch, output_size)
    # bf16 MXU inputs (f32 accumulation) -> keep a loose tolerance.
    assert jnp.allclose(out, ref, atol=2e-2, rtol=2e-2)

    print("KERNEL_OK")
</pallas_src>

<mosaic_0001>
module attributes {stable_mosaic.version = 11 : i64} {
  func.func @lstm_label_predictor_kernel(%arg0: memref<64x11xbf16, #tpu.memory_space<vmem>>, %arg1: memref<11x512xbf16, #tpu.memory_space<vmem>>, %arg2: memref<128x512xbf16, #tpu.memory_space<vmem>>, %arg3: memref<1x512xf32, #tpu.memory_space<vmem>>, %arg4: memref<128x128xbf16, #tpu.memory_space<vmem>>, %arg5: memref<1x128xf32, #tpu.memory_space<vmem>>, %arg6: memref<8x128xf32, #tpu.memory_space<vmem>>, %arg7: memref<64x512xf32, #tpu.memory_space<vmem>>) attributes {dimension_semantics = [], scalar_prefetch = 0 : i64, scratch_operands = 1 : i64, tpu.core_type = #tpu.core_type<tc>} {
    %c0 = arith.constant 0 : index
    %c0_0 = arith.constant 0 : index
    %0 = vector.load %arg2[%c0, %c0_0] : memref<128x512xbf16, #tpu.memory_space<vmem>>, vector<128x512xbf16>
    %c0_1 = arith.constant 0 : index
    %c0_2 = arith.constant 0 : index
    %1 = vector.load %arg0[%c0_1, %c0_2] : memref<64x11xbf16, #tpu.memory_space<vmem>>, vector<64x11xbf16>
    %c0_3 = arith.constant 0 : index
    %c0_4 = arith.constant 0 : index
    %2 = vector.load %arg1[%c0_3, %c0_4] : memref<11x512xbf16, #tpu.memory_space<vmem>>, vector<11x512xbf16>
    %cst = arith.constant dense<0.000000e+00> : vector<64x512xf32>
    %3 = tpu.matmul %1, %2, %cst {dimension_numbers = #tpu.dot_dimension_numbers<[1], [0], [0], [1], [0, 0, 1, 1], [], []>} : vector<64x11xbf16>, vector<11x512xbf16>, vector<64x512xf32> -> vector<64x512xf32>
    %c0_5 = arith.constant 0 : index
    %c0_6 = arith.constant 0 : index
    %4 = vector.load %arg3[%c0_5, %c0_6] : memref<1x512xf32, #tpu.memory_space<vmem>>, vector<1x512xf32>
    %5 = vector.broadcast %4 : vector<1x512xf32> to vector<64x512xf32>
    %6 = arith.addf %3, %5 : vector<64x512xf32>
    %c0_7 = arith.constant 0 : index
    %c0_8 = arith.constant 0 : index
    %7 = vector.load %arg7[%c0_7, %c0_8] : memref<64x512xf32, #tpu.memory_space<vmem>>, vector<64x512xf32>
    tpu.vector_store %arg7[%c0_7, %c0_8], %6 {strides = array<i32>} : memref<64x512xf32, #tpu.memory_space<vmem>>, vector<64x512xf32>,
    %cst_9 = arith.constant 0.000000e+00 : f32
    %8 = vector.broadcast %cst_9 : f32 to vector<8x128xf32>
    %cst_10 = arith.constant 0.000000e+00 : f32
    %9 = vector.broadcast %cst_10 : f32 to vector<8x128xf32>
    %c0_11 = arith.constant 0 : index
    %c0_12 = arith.constant 0 : index
    %10 = vector.load %arg7[%c0_11, %c0_12] : memref<64x512xf32, #tpu.memory_space<vmem>>, vector<8x512xf32>
    %11 = arith.truncf %8 : vector<8x128xf32> to vector<8x128xbf16>
    %cst_13 = arith.constant dense<0.000000e+00> : vector<8x512xf32>
    %12 = tpu.matmul %11, %0, %cst_13 {dimension_numbers = #tpu.dot_dimension_numbers<[1], [0], [0], [1], [0, 0, 1, 1], [], []>} : vector<8x128xbf16>, vector<128x512xbf16>, vector<8x512xf32> -> vector<8x512xf32>
    %13 = arith.addf %10, %12 : vector<8x512xf32>
    %14 = vector.extract_strided_slice %13 {offsets = [0, 0], sizes = [8, 384], strides = [1, 1]} : vector<8x512xf32> to vector<8x384xf32>
    %cst_14 = arith.constant 5.000000e-01 : f32
    %15 = vector.broadcast %cst_14 : f32 to vector<8x384xf32>
    %16 = arith.mulf %15, %14 : vector<8x384xf32>
    %17 = math.tanh %16 : vector<8x384xf32>
    %cst_15 = arith.constant 1.000000e+00 : f32
    %18 = vector.broadcast %cst_15 : f32 to vector<8x384xf32>
    %19 = arith.addf %17, %18 : vector<8x384xf32>
    %cst_16 = arith.constant 5.000000e-01 : f32
    %20 = vector.broadcast %cst_16 : f32 to vector<8x384xf32>
    %21 = arith.mulf %20, %19 : vector<8x384xf32>
    %22 = vector.extract_strided_slice %21 {offsets = [0, 0], sizes = [8, 128], strides = [1, 1]} : vector<8x384xf32> to vector<8x128xf32>
    %23 = vector.extract_strided_slice %21 {offsets = [0, 128], sizes = [8, 128], strides = [1, 1]} : vector<8x384xf32> to vector<8x128xf32>
    %24 = vector.extract_strided_slice %21 {offsets = [0, 256], sizes = [8, 128], strides = [1, 1]} : vector<8x384xf32> to vector<8x128xf32>
    %25 = vector.extract_strided_slice %13 {offsets = [0, 384], sizes = [8, 128], strides = [1, 1]} : vector<8x512xf32> to vector<8x128xf32>
    %26 = math.tanh %25 : vector<8x128xf32>
    %27 = arith.mulf %23, %9 : vector<8x128xf32>
    %28 = arith.mulf %22, %26 : vector<8x128xf32>
    %29 = arith.addf %27, %28 : vector<8x128xf32>
    %30 = math.tanh %29 : vector<8x128xf32>
    %31 = arith.mulf %24, %30 : vector<8x128xf32>
    %c8 = arith.constant 8 : index
    %c0_17 = arith.constant 0 : index
    %32 = vector.load %arg7[%c8, %c0_17] : memref<64x512xf32, #tpu.memory_space<vmem>>, vector<8x512xf32>
    %33 = arith.truncf %31 : vector<8x128xf32> to vector<8x128xbf16>
    %cst_18 = arith.constant dense<0.000000e+00> : vector<8x512xf32>
    %34 = tpu.matmul %33, %0, %cst_18 {dimension_numbers = #tpu.dot_dimension_numbers<[1], [0], [0], [1], [0, 0, 1, 1], [], []>} : vector<8x128xbf16>, vector<128x512xbf16>, vector<8x512xf32> -> vector<8x512xf32>
    %35 = arith.addf %32, %34 : vector<8x512xf32>
    %36 = vector.extract_strided_slice %35 {offsets = [0, 0], sizes = [8, 384], strides = [1, 1]} : vector<8x512xf32> to vector<8x384xf32>
    %cst_19 = arith.constant 5.000000e-01 : f32
    %37 = vector.broadcast %cst_19 : f32 to vector<8x384xf32>
    %38 = arith.mulf %37, %36 : vector<8x384xf32>
    %39 = math.tanh %38 : vector<8x384xf32>
    %cst_20 = arith.constant 1.000000e+00 : f32
    %40 = vector.broadcast %cst_20 : f32 to vector<8x384xf32>
    %41 = arith.addf %39, %40 : vector<8x384xf32>
    %cst_21 = arith.constant 5.000000e-01 : f32
    %42 = vector.broadcast %cst_21 : f32 to vector<8x384xf32>
    %43 = arith.mulf %42, %41 : vector<8x384xf32>
    %44 = vector.extract_strided_slice %43 {offsets = [0, 0], sizes = [8, 128], strides = [1, 1]} : vector<8x384xf32> to vector<8x128xf32>
    %45 = vector.extract_strided_slice %43 {offsets = [0, 128], sizes = [8, 128], strides = [1, 1]} : vector<8x384xf32> to vector<8x128xf32>
    %46 = vector.extract_strided_slice %43 {offsets = [0, 256], sizes = [8, 128], strides = [1, 1]} : vector<8x384xf32> to vector<8x128xf32>
    %47 = vector.extract_strided_slice %35 {offsets = [0, 384], sizes = [8, 128], strides = [1, 1]} : vector<8x512xf32> to vector<8x128xf32>
    %48 = math.tanh %47 : vector<8x128xf32>
    %49 = arith.mulf %45, %29 : vector<8x128xf32>
    %50 = arith.mulf %44, %48 : vector<8x128xf32>
    %51 = arith.addf %49, %50 : vector<8x128xf32>
    %52 = math.tanh %51 : vector<8x128xf32>
    %53 = arith.mulf %46, %52 : vector<8x128xf32>
    %c16 = arith.constant 16 : index
    %c0_22 = arith.constant 0 : index
    %54 = vector.load %arg7[%c16, %c0_22] : memref<64x512xf32, #tpu.memory_space<vmem>>, vector<8x512xf32>
    %55 = arith.truncf %53 : vector<8x128xf32> to vector<8x128xbf16>
    %cst_23 = arith.constant dense<0.000000e+00> : vector<8x512xf32>
    %56 = tpu.matmul %55, %0, %cst_23 {dimension_numbers = #tpu.dot_dimension_numbers<[1], [0], [0], [1], [0, 0, 1, 1], [], []>} : vector<8x128xbf16>, vector<128x512xbf16>, vector<8x512xf32> -> vector<8x512xf32>
    %57 = arith.addf %54, %56 : vector<8x512xf32>
    %58 = vector.extract_strided_slice %57 {offsets = [0, 0], sizes = [8, 384], strides = [1, 1]} : vector<8x512xf32> to vector<8x384xf32>
    %cst_24 = arith.constant 5.000000e-01 : f32
    %59 = vector.broadcast %cst_24 : f32 to vector<8x384xf32>
    %60 = arith.mulf %59, %58 : vector<8x384xf32>
    %61 = math.tanh %60 : vector<8x384xf32>
    %cst_25 = arith.constant 1.000000e+00 : f32
    %62 = vector.broadcast %cst_25 : f32 to vector<8x384xf32>
    %63 = arith.addf %61, %62 : vector<8x384xf32>
    %cst_26 = arith.constant 5.000000e-01 : f32
    %64 = vector.broadcast %cst_26 : f32 to vector<8x384xf32>
    %65 = arith.mulf %64, %63 : vector<8x384xf32>
    %66 = vector.extract_strided_slice %65 {offsets = [0, 0], sizes = [8, 128], strides = [1, 1]} : vector<8x384xf32> to vector<8x128xf32>
    %67 = vector.extract_strided_slice %65 {offsets = [0, 128], sizes = [8, 128], strides = [1, 1]} : vector<8x384xf32> to vector<8x128xf32>
    %68 = vector.extract_strided_slice %65 {offsets = [0, 256], sizes = [8, 128], strides = [1, 1]} : vector<8x384xf32> to vector<8x128xf32>
    %69 = vector.extract_strided_slice %57 {offsets = [0, 384], sizes = [8, 128], strides = [1, 1]} : vector<8x512xf32> to vector<8x128xf32>
    %70 = math.tanh %69 : vector<8x128xf32>
    %71 = arith.mulf %67, %51 : vector<8x128xf32>
    %72 = arith.mulf %66, %70 : vector<8x128xf32>
    %73 = arith.addf %71, %72 : vector<8x128xf32>
    %74 = math.tanh %73 : vector<8x128xf32>
    %75 = arith.mulf %68, %74 : vector<8x128xf32>
    %c24 = arith.constant 24 : index
    %c0_27 = arith.constant 0 : index
    %76 = vector.load %arg7[%c24, %c0_27] : memref<64x512xf32, #tpu.memory_space<vmem>>, vector<8x512xf32>
    %77 = arith.truncf %75 : vector<8x128xf32> to vector<8x128xbf16>
    %cst_28 = arith.constant dense<0.000000e+00> : vector<8x512xf32>
    %78 = tpu.matmul %77, %0, %cst_28 {dimension_numbers = #tpu.dot_dimension_numbers<[1], [0], [0], [1], [0, 0, 1, 1], [], []>} : vector<8x128xbf16>, vector<128x512xbf16>, vector<8x512xf32> -> vector<8x512xf32>
    %79 = arith.addf %76, %78 : vector<8x512xf32>
    %80 = vector.extract_strided_slice %79 {offsets = [0, 0], sizes = [8, 384], strides = [1, 1]} : vector<8x512xf32> to vector<8x384xf32>
    %cst_29 = arith.constant 5.000000e-01 : f32
    %81 = vector.broadcast %cst_29 : f32 to vector<8x384xf32>
    %82 = arith.mulf %81, %80 : vector<8x384xf32>
    %83 = math.tanh %82 : vector<8x384xf32>
    %cst_30 = arith.constant 1.000000e+00 : f32
    %84 = vector.broadcast %cst_30 : f32 to vector<8x384xf32>
    %85 = arith.addf %83, %84 : vector<8x384xf32>
    %cst_31 = arith.constant 5.000000e-01 : f32
    %86 = vector.broadcast %cst_31 : f32 to vector<8x384xf32>
    %87 = arith.mulf %86, %85 : vector<8x384xf32>
    %88 = vector.extract_strided_slice %87 {offsets = [0, 0], sizes = [8, 128], strides = [1, 1]} : vector<8x384xf32> to vector<8x128xf32>
    %89 = vector.extract_strided_slice %87 {offsets = [0, 128], sizes = [8, 128], strides = [1, 1]} : vector<8x384xf32> to vector<8x128xf32>
    %90 = vector.extract_strided_slice %87 {offsets = [0, 256], sizes = [8, 128], strides = [1, 1]} : vector<8x384xf32> to vector<8x128xf32>
    %91 = vector.extract_strided_slice %79 {offsets = [0, 384], sizes = [8, 128], strides = [1, 1]} : vector<8x512xf32> to vector<8x128xf32>
    %92 = math.tanh %91 : vector<8x128xf32>
    %93 = arith.mulf %89, %73 : vector<8x128xf32>
    %94 = arith.mulf %88, %92 : vector<8x128xf32>
    %95 = arith.addf %93, %94 : vector<8x128xf32>
    %96 = math.tanh %95 : vector<8x128xf32>
    %97 = arith.mulf %90, %96 : vector<8x128xf32>
    %c32 = arith.constant 32 : index
    %c0_32 = arith.constant 0 : index
    %98 = vector.load %arg7[%c32, %c0_32] : memref<64x512xf32, #tpu.memory_space<vmem>>, vector<8x512xf32>
    %99 = arith.truncf %97 : vector<8x128xf32> to vector<8x128xbf16>
    %cst_33 = arith.constant dense<0.000000e+00> : vector<8x512xf32>
    %100 = tpu.matmul %99, %0, %cst_33 {dimension_numbers = #tpu.dot_dimension_numbers<[1], [0], [0], [1], [0, 0, 1, 1], [], []>} : vector<8x128xbf16>, vector<128x512xbf16>, vector<8x512xf32> -> vector<8x512xf32>
    %101 = arith.addf %98, %100 : vector<8x512xf32>
    %102 = vector.extract_strided_slice %101 {offsets = [0, 0], sizes = [8, 384], strides = [1, 1]} : vector<8x512xf32> to vector<8x384xf32>
    %cst_34 = arith.constant 5.000000e-01 : f32
    %103 = vector.broadcast %cst_34 : f32 to vector<8x384xf32>
    %104 = arith.mulf %103, %102 : vector<8x384xf32>
    %105 = math.tanh %104 : vector<8x384xf32>
    %cst_35 = arith.constant 1.000000e+00 : f32
    %106 = vector.broadcast %cst_35 : f32 to vector<8x384xf32>
    %107 = arith.addf %105, %106 : vector<8x384xf32>
    %cst_36 = arith.constant 5.000000e-01 : f32
    %108 = vector.broadcast %cst_36 : f32 to vector<8x384xf32>
    %109 = arith.mulf %108, %107 : vector<8x384xf32>
    %110 = vector.extract_strided_slice %109 {offsets = [0, 0], sizes = [8, 128], strides = [1, 1]} : vector<8x384xf32> to vector<8x128xf32>
    %111 = vector.extract_strided_slice %109 {offsets = [0, 128], sizes = [8, 128], strides = [1, 1]} : vector<8x384xf32> to vector<8x128xf32>
    %112 = vector.extract_strided_slice %109 {offsets = [0, 256], sizes = [8, 128], strides = [1, 1]} : vector<8x384xf32> to vector<8x128xf32>
    %113 = vector.extract_strided_slice %101 {offsets = [0, 384], sizes = [8, 128], strides = [1, 1]} : vector<8x512xf32> to vector<8x128xf32>
    %114 = math.tanh %113 : vector<8x128xf32>
    %115 = arith.mulf %111, %95 : vector<8x128xf32>
    %116 = arith.mulf %110, %114 : vector<8x128xf32>
    %117 = arith.addf %115, %116 : vector<8x128xf32>
    %118 = math.tanh %117 : vector<8x128xf32>
    %119 = arith.mulf %112, %118 : vector<8x128xf32>
    %c40 = arith.constant 40 : index
    %c0_37 = arith.constant 0 : index
    %120 = vector.load %arg7[%c40, %c0_37] : memref<64x512xf32, #tpu.memory_space<vmem>>, vector<8x512xf32>
    %121 = arith.truncf %119 : vector<8x128xf32> to vector<8x128xbf16>
    %cst_38 = arith.constant dense<0.000000e+00> : vector<8x512xf32>
    %122 = tpu.matmul %121, %0, %cst_38 {dimension_numbers = #tpu.dot_dimension_numbers<[1], [0], [0], [1], [0, 0, 1, 1], [], []>} : vector<8x128xbf16>, vector<128x512xbf16>, vector<8x512xf32> -> vector<8x512xf32>
    %123 = arith.addf %120, %122 : vector<8x512xf32>
    %124 = vector.extract_strided_slice %123 {offsets = [0, 0], sizes = [8, 384], strides = [1, 1]} : vector<8x512xf32> to vector<8x384xf32>
    %cst_39 = arith.constant 5.000000e-01 : f32
    %125 = vector.broadcast %cst_39 : f32 to vector<8x384xf32>
    %126 = arith.mulf %125, %124 : vector<8x384xf32>
    %127 = math.tanh %126 : vector<8x384xf32>
    %cst_40 = arith.constant 1.000000e+00 : f32
    %128 = vector.broadcast %cst_40 : f32 to vector<8x384xf32>
    %129 = arith.addf %127, %128 : vector<8x384xf32>
    %cst_41 = arith.constant 5.000000e-01 : f32
    %130 = vector.broadcast %cst_41 : f32 to vector<8x384xf32>
    %131 = arith.mulf %130, %129 : vector<8x384xf32>
    %132 = vector.extract_strided_slice %131 {offsets = [0, 0], sizes = [8, 128], strides = [1, 1]} : vector<8x384xf32> to vector<8x128xf32>
    %133 = vector.extract_strided_slice %131 {offsets = [0, 128], sizes = [8, 128], strides = [1, 1]} : vector<8x384xf32> to vector<8x128xf32>
    %134 = vector.extract_strided_slice %131 {offsets = [0, 256], sizes = [8, 128], strides = [1, 1]} : vector<8x384xf32> to vector<8x128xf32>
    %135 = vector.extract_strided_slice %123 {offsets = [0, 384], sizes = [8, 128], strides = [1, 1]} : vector<8x512xf32> to vector<8x128xf32>
    %136 = math.tanh %135 : vector<8x128xf32>
    %137 = arith.mulf %133, %117 : vector<8x128xf32>
    %138 = arith.mulf %132, %136 : vector<8x128xf32>
    %139 = arith.addf %137, %138 : vector<8x128xf32>
    %140 = math.tanh %139 : vector<8x128xf32>
    %141 = arith.mulf %134, %140 : vector<8x128xf32>
    %c48 = arith.constant 48 : index
    %c0_42 = arith.constant 0 : index
    %142 = vector.load %arg7[%c48, %c0_42] : memref<64x512xf32, #tpu.memory_space<vmem>>, vector<8x512xf32>
    %143 = arith.truncf %141 : vector<8x128xf32> to vector<8x128xbf16>
    %cst_43 = arith.constant dense<0.000000e+00> : vector<8x512xf32>
    %144 = tpu.matmul %143, %0, %cst_43 {dimension_numbers = #tpu.dot_dimension_numbers<[1], [0], [0], [1], [0, 0, 1, 1], [], []>} : vector<8x128xbf16>, vector<128x512xbf16>, vector<8x512xf32> -> vector<8x512xf32>
    %145 = arith.addf %142, %144 : vector<8x512xf32>
    %146 = vector.extract_strided_slice %145 {offsets = [0, 0], sizes = [8, 384], strides = [1, 1]} : vector<8x512xf32> to vector<8x384xf32>
    %cst_44 = arith.constant 5.000000e-01 : f32
    %147 = vector.broadcast %cst_44 : f32 to vector<8x384xf32>
    %148 = arith.mulf %147, %146 : vector<8x384xf32>
    %149 = math.tanh %148 : vector<8x384xf32>
    %cst_45 = arith.constant 1.000000e+00 : f32
    %150 = vector.broadcast %cst_45 : f32 to vector<8x384xf32>
    %151 = arith.addf %149, %150 : vector<8x384xf32>
    %cst_46 = arith.constant 5.000000e-01 : f32
    %152 = vector.broadcast %cst_46 : f32 to vector<8x384xf32>
    %153 = arith.mulf %152, %151 : vector<8x384xf32>
    %154 = vector.extract_strided_slice %153 {offsets = [0, 0], sizes = [8, 128], strides = [1, 1]} : vector<8x384xf32> to vector<8x128xf32>
    %155 = vector.extract_strided_slice %153 {offsets = [0, 128], sizes = [8, 128], strides = [1, 1]} : vector<8x384xf32> to vector<8x128xf32>
    %156 = vector.extract_strided_slice %153 {offsets = [0, 256], sizes = [8, 128], strides = [1, 1]} : vector<8x384xf32> to vector<8x128xf32>
    %157 = vector.extract_strided_slice %145 {offsets = [0, 384], sizes = [8, 128], strides = [1, 1]} : vector<8x512xf32> to vector<8x128xf32>
    %158 = math.tanh %157 : vector<8x128xf32>
    %159 = arith.mulf %155, %139 : vector<8x128xf32>
    %160 = arith.mulf %154, %158 : vector<8x128xf32>
    %161 = arith.addf %159, %160 : vector<8x128xf32>
    %162 = math.tanh %161 : vector<8x128xf32>
    %163 = arith.mulf %156, %162 : vector<8x128xf32>
    %c56 = arith.constant 56 : index
    %c0_47 = arith.constant 0 : index
    %164 = vector.load %arg7[%c56, %c0_47] : memref<64x512xf32, #tpu.memory_space<vmem>>, vector<8x512xf32>
    %165 = arith.truncf %163 : vector<8x128xf32> to vector<8x128xbf16>
    %cst_48 = arith.constant dense<0.000000e+00> : vector<8x512xf32>
    %166 = tpu.matmul %165, %0, %cst_48 {dimension_numbers = #tpu.dot_dimension_numbers<[1], [0], [0], [1], [0, 0, 1, 1], [], []>} : vector<8x128xbf16>, vector<128x512xbf16>, vector<8x512xf32> -> vector<8x512xf32>
    %167 = arith.addf %164, %166 : vector<8x512xf32>
    %168 = vector.extract_strided_slice %167 {offsets = [0, 0], sizes = [8, 384], strides = [1, 1]} : vector<8x512xf32> to vector<8x384xf32>
    %cst_49 = arith.constant 5.000000e-01 : f32
    %169 = vector.broadcast %cst_49 : f32 to vector<8x384xf32>
    %170 = arith.mulf %169, %168 : vector<8x384xf32>
    %171 = math.tanh %170 : vector<8x384xf32>
    %cst_50 = arith.constant 1.000000e+00 : f32
    %172 = vector.broadcast %cst_50 : f32 to vector<8x384xf32>
    %173 = arith.addf %171, %172 : vector<8x384xf32>
    %cst_51 = arith.constant 5.000000e-01 : f32
    %174 = vector.broadcast %cst_51 : f32 to vector<8x384xf32>
    %175 = arith.mulf %174, %173 : vector<8x384xf32>
    %176 = vector.extract_strided_slice %175 {offsets = [0, 0], sizes = [8, 128], strides = [1, 1]} : vector<8x384xf32> to vector<8x128xf32>
    %177 = vector.extract_strided_slice %175 {offsets = [0, 128], sizes = [8, 128], strides = [1, 1]} : vector<8x384xf32> to vector<8x128xf32>
    %178 = vector.extract_strided_slice %175 {offsets = [0, 256], sizes = [8, 128], strides = [1, 1]} : vector<8x384xf32> to vector<8x128xf32>
    %179 = vector.extract_strided_slice %167 {offsets = [0, 384], sizes = [8, 128], strides = [1, 1]} : vector<8x512xf32> to vector<8x128xf32>
    %180 = math.tanh %179 : vector<8x128xf32>
    %181 = arith.mulf %177, %161 : vector<8x128xf32>
    %182 = arith.mulf %176, %180 : vector<8x128xf32>
    %183 = arith.addf %181, %182 : vector<8x128xf32>
    %184 = math.tanh %183 : vector<8x128xf32>
    %185 = arith.mulf %178, %184 : vector<8x128xf32>
    %186 = arith.truncf %185 : vector<8x128xf32> to vector<8x128xbf16>
    %c0_52 = arith.constant 0 : index
    %c0_53 = arith.constant 0 : index
    %187 = vector.load %arg4[%c0_52, %c0_53] : memref<128x128xbf16, #tpu.memory_space<vmem>>, vector<128x128xbf16>
    %cst_54 = arith.constant dense<0.000000e+00> : vector<8x128xf32>
    %188 = tpu.matmul %186, %187, %cst_54 {dimension_numbers = #tpu.dot_dimension_numbers<[1], [0], [0], [1], [0, 0, 1, 1], [], []>} : vector<8x128xbf16>, vector<128x128xbf16>, vector<8x128xf32> -> vector<8x128xf32>
    %c0_55 = arith.constant 0 : index
    %c0_56 = arith.constant 0 : index
    %189 = vector.load %arg5[%c0_55, %c0_56] : memref<1x128xf32, #tpu.memory_space<vmem>>, vector<1x128xf32>
    %190 = vector.broadcast %189 : vector<1x128xf32> to vector<8x128xf32>
    %191 = arith.addf %188, %190 : vector<8x128xf32>
    %cst_57 = arith.constant 5.000000e-01 : f32
    %192 = vector.broadcast %cst_57 : f32 to vector<8x128xf32>
    %193 = arith.mulf %192, %191 : vector<8x128xf32>
    %194 = math.tanh %193 : vector<8x128xf32>
    %cst_58 = arith.constant 1.000000e+00 : f32
    %195 = vector.broadcast %cst_58 : f32 to vector<8x128xf32>
    %196 = arith.addf %194, %195 : vector<8x128xf32>
    %cst_59 = arith.constant 5.000000e-01 : f32
    %197 = vector.broadcast %cst_59 : f32 to vector<8x128xf32>
    %198 = arith.mulf %197, %196 : vector<8x128xf32>
    %c0_60 = arith.constant 0 : index
    %c0_61 = arith.constant 0 : index
    %199 = vector.load %arg6[%c0_60, %c0_61] : memref<8x128xf32, #tpu.memory_space<vmem>>, vector<8x128xf32>
    tpu.vector_store %arg6[%c0_60, %c0_61], %198 {strides = array<i32>} : memref<8x128xf32, #tpu.memory_space<vmem>>, vector<8x128xf32>,
    return
  }
}

</mosaic_0001>

<llo_original>
// kernel: tpu_custom_call.1
$region0: #{tpu_custom_call.1}
  #allocation0 [shape = 'u32[]', space=smem, size = 0x4, offset = 0x4, fixed_abs, tag = 'smem constant byte address 0x4 - core index']
  #allocation1 [shape = 'u32[144,128]{1,0:T(1,128)}', space=vmem, size = 0x12000, scoped, tag = 'internal scratch']
  #allocation2 [shape = 'f32[64,512]{1,0:T(8,128)}', space=vmem, size = 0x20000, scoped, tag = 'scratch operand']
  %s0 = inlined_call_operand.vmem [shape: bf16[64,11], index: 0, kind: input, shape index: {}]
  %s1 = inlined_call_operand.vmem [shape: bf16[11,512], index: 1, kind: input, shape index: {}]
  %s2 = inlined_call_operand.hbm [shape: bf16[128,512], index: 2, kind: input, shape index: {}]
  %s3 = inlined_call_operand.vmem [shape: f32[1,512], index: 3, kind: input, shape index: {}]
  %s4 = inlined_call_operand.hbm [shape: bf16[128,128], index: 4, kind: input, shape index: {}]
  %s5 = inlined_call_operand.vmem [shape: f32[1,128], index: 5, kind: input, shape index: {}]
  %s6 = inlined_call_operand.hbm [shape: f32[8,128], index: 6, kind: output, shape index: {}]
  %s7 = sld [smem:[#allocation0]]
  $region42: #{tpu_custom_call.1} parent=0
    _
  %s9 = ssub.s32 1, %s7
  %s10 = scalar_select 0, %s9, %s7
  $region1: #{tpu_custom_call.1} parent=0
    #allocation3 [shape = 'u8[131072]{0}', space=vmem, size = 0x20000, scoped, tag = 'input window, operand 2, single buffered']
    #allocation4 [shape = 's32[1]{0}', space=sflag, size = 0x4, scoped, tag = 'scoped memory for tpu_custom_call.1']
    #allocation5 [shape = 's32[1]{0}', space=sflag, size = 0x4, scoped, tag = 'scoped memory for tpu_custom_call.1']
    #allocation6 [shape = 'u8[32768]{0}', space=vmem, size = 0x8000, scoped, tag = 'input window, operand 4, single buffered']
    #allocation7 [shape = 's32[1]{0}', space=sflag, size = 0x4, scoped, tag = 'scoped memory for tpu_custom_call.1']
    #allocation8 [shape = 'u8[4096]{0}', space=vmem, size = 0x1000, scoped, tag = 'output window, operand 0, single buffered']
    %11 = vsyncpa [#allocation4], 0
    %12 = vsyncpa [#allocation7], 0
    %13 = vsyncpa [#allocation5], 0
    // Predicated region
    $region2: #{tpu_custom_call.1} parent=1 // pred_check
      _
    $region3: #{tpu_custom_call.1} parent=1 // pred_check_branch
      %15 = sbr.rel (0) target = $region5
    $region4: #{tpu_custom_call.1} parent=1 // pred_region
      _
    $region5: #{tpu_custom_call.1} parent=1 // pred_fallthru
      _
    // Predicated region
    $region6: #{tpu_custom_call.1} parent=1 // pred_check
      _
    $region7: #{tpu_custom_call.1} parent=1 // pred_check_branch
      %17 = sbr.rel (0) target = $region9
    $region8: #{tpu_custom_call.1} parent=1 // pred_region
      _
    $region9: #{tpu_custom_call.1} parent=1 // pred_fallthru
      _
    // Predicated region
    $region10: #{tpu_custom_call.1} parent=1 // pred_check
      _
    $region11: #{tpu_custom_call.1} parent=1 // pred_check_branch
      %19 = sbr.rel (0) target = $region13
    $region12: #{tpu_custom_call.1} parent=1 // pred_region
      %s21 = ssub.s32 4096, 4096
      %22 = vsyncadd [#allocation4], %s21
      %s23 = sshll.u32 [#allocation3], 4
      %s24 = int_to_ptr.vmem [resolvable:$true] %s23
      %29 = dma.hbm_to_vmem [thread:$0]  %s2, 4096, %s24, [#allocation4], 256, 256, 16
    $region13: #{tpu_custom_call.1} parent=1 // pred_fallthru
      _
    // Predicated region
    $region14: #{tpu_custom_call.1} parent=1 // pred_check
      _
    $region15: #{tpu_custom_call.1} parent=1 // pred_check_branch
      %31 = sbr.rel (0) target = $region17
    $region16: #{tpu_custom_call.1} parent=1 // pred_region
      _
    $region17: #{tpu_custom_call.1} parent=1 // pred_fallthru
      _
    // Predicated region
    $region18: #{tpu_custom_call.1} parent=1 // pred_check
      _
    $region19: #{tpu_custom_call.1} parent=1 // pred_check_branch
      %33 = sbr.rel (0) target = $region21
    $region20: #{tpu_custom_call.1} parent=1 // pred_region
      %s35 = ssub.s32 1024, 1024
      %36 = vsyncadd [#allocation7], %s35
      %s37 = sshll.u32 [#allocation6], 4
      %s38 = int_to_ptr.vmem [resolvable:$true] %s37
      %43 = dma.hbm_to_vmem [thread:$0]  %s4, 1024, %s38, [#allocation7], 64, 64, 4
    $region21: #{tpu_custom_call.1} parent=1 // pred_fallthru
      _
    // Predicated region
    $region22: #{tpu_custom_call.1} parent=1 // pred_check
      _
    $region23: #{tpu_custom_call.1} parent=1 // pred_check_branch
      %45 = sbr.rel (0) target = $region25
    $region24: #{tpu_custom_call.1} parent=1 // pred_region
      _
    $region25: #{tpu_custom_call.1} parent=1 // pred_fallthru
      _
    // Predicated region
    $region26: #{tpu_custom_call.1} parent=1 // pred_check
      _
    $region27: #{tpu_custom_call.1} parent=1 // pred_check_branch
      %47 = sbr.rel (0) target = $region29
    $region28: #{tpu_custom_call.1} parent=1 // pred_region
      %48 = dma.done [#allocation4], 4096
    $region29: #{tpu_custom_call.1} parent=1 // pred_fallthru
      _
    // Predicated region
    $region30: #{tpu_custom_call.1} parent=1 // pred_check
      _
    $region31: #{tpu_custom_call.1} parent=1 // pred_check_branch
      %50 = sbr.rel (0) target = $region33
    $region32: #{tpu_custom_call.1} parent=1 // pred_region
      %51 = dma.done [#allocation7], 1024
    $region33: #{tpu_custom_call.1} parent=1 // pred_fallthru
      _
    %v53 = vld [vmem:[#allocation3] sm:$0xff]
    %v54 = vld [vmem:[#allocation3 + $0x8] sm:$0xff]
    %v55 = vld [vmem:[#allocation3 + $0x10] sm:$0xff]
    %v56 = vld [vmem:[#allocation3 + $0x18] sm:$0xff]
    %v57 = vld [vmem:[#allocation3 + $0x20] sm:$0xff]
    %v58 = vld [vmem:[#allocation3 + $0x28] sm:$0xff]
    %v59 = vld [vmem:[#allocation3 + $0x30] sm:$0xff]
    %v60 = vld [vmem:[#allocation3 + $0x38] sm:$0xff]
    %v61 = vld [vmem:[#allocation3 + $0x40] sm:$0xff]
    %v62 = vld [vmem:[#allocation3 + $0x48] sm:$0xff]
    %v63 = vld [vmem:[#allocation3 + $0x50] sm:$0xff]
    %v64 = vld [vmem:[#allocation3 + $0x58] sm:$0xff]
    %v65 = vld [vmem:[#allocation3 + $0x60] sm:$0xff]
    %v66 = vld [vmem:[#allocation3 + $0x68] sm:$0xff]
    %v67 = vld [vmem:[#allocation3 + $0x70] sm:$0xff]
    %v68 = vld [vmem:[#allocation3 + $0x78] sm:$0xff]
    %v69 = vld [vmem:[#allocation3 + $0x80] sm:$0xff]
    %v70 = vld [vmem:[#allocation3 + $0x88] sm:$0xff]
    %v71 = vld [vmem:[#allocation3 + $0x90] sm:$0xff]
    %v72 = vld [vmem:[#allocation3 + $0x98] sm:$0xff]
    %v73 = vld [vmem:[#allocation3 + $0xa0] sm:$0xff]
    %v74 = vld [vmem:[#allocation3 + $0xa8] sm:$0xff]
    %v75 = vld [vmem:[#allocation3 + $0xb0] sm:$0xff]
    %v76 = vld [vmem:[#allocation3 + $0xb8] sm:$0xff]
    %v77 = vld [vmem:[#allocation3 + $0xc0] sm:$0xff]
    %v78 = vld [vmem:[#allocation3 + $0xc8] sm:$0xff]
    %v79 = vld [vmem:[#allocation3 + $0xd0] sm:$0xff]
    %v80 = vld [vmem:[#allocation3 + $0xd8] sm:$0xff]
    %v81 = vld [vmem:[#allocation3 + $0xe0] sm:$0xff]
    %v82 = vld [vmem:[#allocation3 + $0xe8] sm:$0xff]
    %v83 = vld [vmem:[#allocation3 + $0xf0] sm:$0xff]
    %v84 = vld [vmem:[#allocation3 + $0xf8] sm:$0xff]
    %v85 = vld [vmem:[%s0] sm:$0xf]
    %v86 = vld [vmem:[%s0 + $0x4] sm:$0xf]
    %v87 = vld [vmem:[%s0 + $0x8] sm:$0xf]
    %v88 = vld [vmem:[%s0 + $0xc] sm:$0xf]
    %v89 = vld [vmem:[%s0 + $0x10] sm:$0xf]
    %v90 = vld [vmem:[%s0 + $0x14] sm:$0xf]
    %v91 = vld [vmem:[%s0 + $0x18] sm:$0xf]
    %v92 = vld [vmem:[%s0 + $0x1c] sm:$0xf]
    %v93 = vld [vmem:[%s1] sm:$0xff]
    %v94 = vld [vmem:[%s1 + $0x8] sm:$0xff]
    %v95 = vld [vmem:[%s1 + $0x10] sm:$0x33]
    %v96 = vld [vmem:[%s1 + $0x18] sm:$0x33]
    %v97 = vld [vmem:[%s3] sm:$0xf]
    %v99 = vlaneseq
    %v100 = vshrl.u32 %v99, 7
    %v101 = vsub.s32 0, %v100
    %v102 = vrot.slane %v97, %v101
    %v103 = vlaneseq
    %v104 = vshrl.u32 %v103, 7
    %v105 = vsub.s32 1, %v104
    %v106 = vrot.slane %v97, %v105
    %v107 = vlaneseq
    %v108 = vshrl.u32 %v107, 7
    %v109 = vsub.s32 2, %v108
    %v110 = vrot.slane %v97, %v109
    %v111 = vlaneseq
    %v112 = vshrl.u32 %v111, 7
    %v113 = vsub.s32 3, %v112
    %v114 = vrot.slane %v97, %v113
    %v127 = vunpack.c.l.b16 %v85
    %v128 = vunpack.c.l.b16 %v86
    %v129 = vunpack.c.l.b16 %v87
    %v130 = vunpack.c.l.b16 %v88
    %v131 = vunpack.c.l.b16 %v89
    %v132 = vunpack.c.l.b16 %v90
    %v133 = vunpack.c.l.b16 %v91
    %v134 = vunpack.c.l.b16 %v92
    %v135 = vpack.c.b16 %v128, %v127
    %v136 = vpack.c.b16 %v130, %v129
    %v137 = vpack.c.b16 %v132, %v131
    %v138 = vpack.c.b16 %v134, %v133
    %v143 = vunpack.c.l.b16 %v93
    %v144 = vunpack.c.h.b16 %v93
    %v145 = vunpack.c.l.b16 %v94
    %v146 = vunpack.c.h.b16 %v94
    %v147 = vunpack.c.l.b16 %v95
    %v148 = vunpack.c.h.b16 %v95
    %v149 = vunpack.c.l.b16 %v96
    %v150 = vunpack.c.h.b16 %v96
    %v151 = vpack.c.b16 %v147, %v143
    %v152 = vpack.c.b16 %v148, %v144
    %v153 = vpack.c.b16 %v149, %v145
    %v154 = vpack.c.b16 %v150, %v146
    %vm155 = vcmask 89088
    %v157 = vsel %vm155, %v135, 0
    %v160 = vsel %vm155, %v136, 0
    %v163 = vsel %vm155, %v137, 0
    %v166 = vsel %vm155, %v138, 0
    %vm168 = vcmask 1044480
    %vm169 = vcmask 1045504
    %v170 = vsel %vm168, 4294967295, 65535
    %v171 = vsel %vm169, %v170, 0
    %v173 = vand.u32 %v151, %v171
    %v176 = vand.u32 %v152, %v171
    %v179 = vand.u32 %v153, %v171
    %v182 = vand.u32 %v154, %v171
    %184 = vmatprep.subr.bf16.mxu0 %v176
    %185 = vmatpush1.bf16.msra.mxu0 %v173
    %186 = vmatprep.subr.bf16.mxu0 0
    %187 = vmatpush1.bf16.msra.mxu0 0
    %188 = vmatprep.subr.bf16.mxu0 0
    %189 = vmatpush1.bf16.msra.mxu0 0
    %190 = vmatprep.subr.bf16.mxu0 0
    %191 = vmatpush1.bf16.msra.mxu0 0
    %192 = vmatprep.subr.bf16.mxu0 0
    %193 = vmatpush1.bf16.msra.mxu0 0
    %194 = vmatprep.subr.bf16.mxu0 0
    %195 = vmatpush1.bf16.msra.mxu0 0
    %196 = vmatprep.subr.bf16.mxu0 0
    %197 = vmatpush1.bf16.msra.mxu0 0
    %198 = vmatprep.subr.bf16.mxu0 0
    %199 = vmatpush1.bf16.msra.mxu0 0
    %200 = vmatprep.subr.bf16.mxu0 0
    %201 = vmatpush1.bf16.msra.mxu0 0
    %202 = vmatprep.subr.bf16.mxu0 0
    %203 = vmatpush1.bf16.msra.mxu0 0
    %204 = vmatprep.subr.bf16.mxu0 0
    %205 = vmatpush1.bf16.msra.mxu0 0
    %206 = vmatprep.subr.bf16.mxu0 0
    %207 = vmatpush1.bf16.msra.mxu0 0
    %208 = vmatprep.subr.bf16.mxu0 0
    %209 = vmatpush1.bf16.msra.mxu0 0
    %210 = vmatprep.subr.bf16.mxu0 0
    %211 = vmatpush1.bf16.msra.mxu0 0
    %212 = vmatprep.subr.bf16.mxu0 0
    %213 = vmatpush1.bf16.msra.mxu0 0
    %214 = vmatprep.subr.bf16.mxu0 0
    %215 = vmatpush1.bf16.msra.mxu0 0
    %216 = vmatprep.mubr.bf16.mxu0 0
    %217 = vmatmul.mubr.bf16.gmra.mrb[0].mxu0 %v157
    %v218 = vpop.f32.mrb[0].mxu0
    %v219 = vadd.f32 %v102, %v218
    %v220 = vpop.f32.mrb[0].mxu0
    %v221 = vadd.f32 %v106, %v220
    %v222 = vpop.f32.mrb[0].mxu0
    %v223 = vadd.f32 %v102, %v222
    %v224 = vpop.f32.mrb[0].mxu0
    %v225 = vadd.f32 %v106, %v224
    %226 = vmatprep.mubr.bf16.mxu0 0
    %227 = vmatmul.mubr.bf16.gmra.mrb[0].mxu0 %v160
    %v228 = vpop.f32.mrb[0].mxu0
    %v229 = vadd.f32 %v102, %v228
    %v230 = vpop.f32.mrb[0].mxu0
    %v231 = vadd.f32 %v106, %v230
    %v232 = vpop.f32.mrb[0].mxu0
    %v233 = vadd.f32 %v102, %v232
    %v234 = vpop.f32.mrb[0].mxu0
    %v235 = vadd.f32 %v106, %v234
    %236 = vmatprep.mubr.bf16.mxu0 0
    %237 = vmatmul.mubr.bf16.gmra.mrb[0].mxu0 %v163
    %v238 = vpop.f32.mrb[0].mxu0
    %v239 = vadd.f32 %v102, %v238
    %v240 = vpop.f32.mrb[0].mxu0
    %v241 = vadd.f32 %v106, %v240
    %v242 = vpop.f32.mrb[0].mxu0
    %v243 = vadd.f32 %v102, %v242
    %v244 = vpop.f32.mrb[0].mxu0
    %v245 = vadd.f32 %v106, %v244
    %246 = vmatprep.mubr.bf16.mxu0 0
    %247 = vmatmul.mubr.bf16.gmra.mrb[0].mxu0 %v166
    %v248 = vpop.f32.mrb[0].mxu0
    %v249 = vadd.f32 %v102, %v248
    %v250 = vpop.f32.mrb[0].mxu0
    %v251 = vadd.f32 %v106, %v250
    %v252 = vpop.f32.mrb[0].mxu0
    %v253 = vadd.f32 %v102, %v252
    %v254 = vpop.f32.mrb[0].mxu0
    %v255 = vadd.f32 %v106, %v254
    %256 = vdwg.mxu0
    %257 = vmatprep.subr.bf16.mxu0 %v182
    %258 = vmatpush1.bf16.msra.mxu0 %v179
    %259 = vmatprep.subr.bf16.mxu0 0
    %260 = vmatpush1.bf16.msra.mxu0 0
    %261 = vmatprep.subr.bf16.mxu0 0
    %262 = vmatpush1.bf16.msra.mxu0 0
    %263 = vmatprep.subr.bf16.mxu0 0
    %264 = vmatpush1.bf16.msra.mxu0 0
    %265 = vmatprep.subr.bf16.mxu0 0
    %266 = vmatpush1.bf16.msra.mxu0 0
    %267 = vmatprep.subr.bf16.mxu0 0
    %268 = vmatpush1.bf16.msra.mxu0 0
    %269 = vmatprep.subr.bf16.mxu0 0
    %270 = vmatpush1.bf16.msra.mxu0 0
    %271 = vmatprep.subr.bf16.mxu0 0
    %272 = vmatpush1.bf16.msra.mxu0 0
    %273 = vmatprep.subr.bf16.mxu0 0
    %274 = vmatpush1.bf16.msra.mxu0 0
    %275 = vmatprep.subr.bf16.mxu0 0
    %276 = vmatpush1.bf16.msra.mxu0 0
    %277 = vmatprep.subr.bf16.mxu0 0
    %278 = vmatpush1.bf16.msra.mxu0 0
    %279 = vmatprep.subr.bf16.mxu0 0
    %280 = vmatpush1.bf16.msra.mxu0 0
    %281 = vmatprep.subr.bf16.mxu0 0
    %282 = vmatpush1.bf16.msra.mxu0 0
    %283 = vmatprep.subr.bf16.mxu0 0
    %284 = vmatpush1.bf16.msra.mxu0 0
    %285 = vmatprep.subr.bf16.mxu0 0
    %286 = vmatpush1.bf16.msra.mxu0 0
    %287 = vmatprep.subr.bf16.mxu0 0
    %288 = vmatpush1.bf16.msra.mxu0 0
    %289 = vmatprep.mubr.bf16.mxu0 0
    %290 = vmatmul.mubr.bf16.gmra.mrb[0].mxu0 %v157
    %v291 = vpop.f32.mrb[0].mxu0
    %v292 = vadd.f32 %v110, %v291
    %v293 = vpop.f32.mrb[0].mxu0
    %v294 = vadd.f32 %v114, %v293
    %v295 = vpop.f32.mrb[0].mxu0
    %v296 = vadd.f32 %v110, %v295
    %v297 = vpop.f32.mrb[0].mxu0
    %v298 = vadd.f32 %v114, %v297
    %299 = vmatprep.mubr.bf16.mxu0 0
    %300 = vmatmul.mubr.bf16.gmra.mrb[0].mxu0 %v160
    %v301 = vpop.f32.mrb[0].mxu0
    %v302 = vadd.f32 %v110, %v301
    %v303 = vpop.f32.mrb[0].mxu0
    %v304 = vadd.f32 %v114, %v303
    %v305 = vpop.f32.mrb[0].mxu0
    %v306 = vadd.f32 %v110, %v305
    %v307 = vpop.f32.mrb[0].mxu0
    %v308 = vadd.f32 %v114, %v307
    %309 = vmatprep.mubr.bf16.mxu0 0
    %310 = vmatmul.mubr.bf16.gmra.mrb[0].mxu0 %v163
    %v311 = vpop.f32.mrb[0].mxu0
    %v312 = vadd.f32 %v110, %v311
    %v313 = vpop.f32.mrb[0].mxu0
    %v314 = vadd.f32 %v114, %v313
    %v315 = vpop.f32.mrb[0].mxu0
    %v316 = vadd.f32 %v110, %v315
    %v317 = vpop.f32.mrb[0].mxu0
    %v318 = vadd.f32 %v114, %v317
    %319 = vmatprep.mubr.bf16.mxu0 0
    %320 = vmatmul.mubr.bf16.gmra.mrb[0].mxu0 %v166
    %v321 = vpop.f32.mrb[0].mxu0
    %v322 = vadd.f32 %v110, %v321
    %v323 = vpop.f32.mrb[0].mxu0
    %v324 = vadd.f32 %v114, %v323
    %v325 = vpop.f32.mrb[0].mxu0
    %v326 = vadd.f32 %v110, %v325
    %v327 = vpop.f32.mrb[0].mxu0
    %v328 = vadd.f32 %v114, %v327
    %329 = vdwg.mxu0
    %330 = vst [vmem:[#allocation2] sm:$0xff] %v219
    %331 = vst [vmem:[#allocation2 + $0x8] sm:$0xff] %v221
    %332 = vst [vmem:[#allocation2 + $0x10] sm:$0xff] %v292
    %333 = vst [vmem:[#allocation2 + $0x18] sm:$0xff] %v294
    %334 = vst [vmem:[#allocation2 + $0x20] sm:$0xff] %v223
    %335 = vst [vmem:[#allocation2 + $0x28] sm:$0xff] %v225
    %336 = vst [vmem:[#allocation2 + $0x30] sm:$0xff] %v296
    %337 = vst [vmem:[#allocation2 + $0x38] sm:$0xff] %v298
    %338 = vst [vmem:[#allocation2 + $0x40] sm:$0xff] %v229
    %339 = vst [vmem:[#allocation2 + $0x48] sm:$0xff] %v231
    %340 = vst [vmem:[#allocation2 + $0x50] sm:$0xff] %v302
    %341 = vst [vmem:[#allocation2 + $0x58] sm:$0xff] %v304
    %342 = vst [vmem:[#allocation2 + $0x60] sm:$0xff] %v233
    %343 = vst [vmem:[#allocation2 + $0x68] sm:$0xff] %v235
    %344 = vst [vmem:[#allocation2 + $0x70] sm:$0xff] %v306
    %345 = vst [vmem:[#allocation2 + $0x78] sm:$0xff] %v308
    %346 = vst [vmem:[#allocation2 + $0x80] sm:$0xff] %v239
    %347 = vst [vmem:[#allocation2 + $0x88] sm:$0xff] %v241
    %348 = vst [vmem:[#allocation2 + $0x90] sm:$0xff] %v312
    %349 = vst [vmem:[#allocation2 + $0x98] sm:$0xff] %v314
    %350 = vst [vmem:[#allocation2 + $0xa0] sm:$0xff] %v243
    %351 = vst [vmem:[#allocation2 + $0xa8] sm:$0xff] %v245
    %352 = vst [vmem:[#allocation2 + $0xb0] sm:$0xff] %v316
    %353 = vst [vmem:[#allocation2 + $0xb8] sm:$0xff] %v318
    %354 = vst [vmem:[#allocation2 + $0xc0] sm:$0xff] %v249
    %355 = vst [vmem:[#allocation2 + $0xc8] sm:$0xff] %v251
    %356 = vst [vmem:[#allocation2 + $0xd0] sm:$0xff] %v322
    %357 = vst [vmem:[#allocation2 + $0xd8] sm:$0xff] %v324
    %358 = vst [vmem:[#allocation2 + $0xe0] sm:$0xff] %v253
    %359 = vst [vmem:[#allocation2 + $0xe8] sm:$0xff] %v255
    %360 = vst [vmem:[#allocation2 + $0xf0] sm:$0xff] %v326
    %361 = vst [vmem:[#allocation2 + $0xf8] sm:$0xff] %v328
    %v362 = vld [vmem:[#allocation2] sm:$0xff]
    %v363 = vld [vmem:[#allocation2 + $0x8] sm:$0xff]
    %v364 = vld [vmem:[#allocation2 + $0x10] sm:$0xff]
    %v365 = vld [vmem:[#allocation2 + $0x18] sm:$0xff]
    %v398 = vunpack.c.l.b16 %v53
    %v399 = vunpack.c.h.b16 %v53
    %v400 = vunpack.c.l.b16 %v54
    %v401 = vunpack.c.h.b16 %v54
    %v402 = vunpack.c.l.b16 %v55
    %v403 = vunpack.c.h.b16 %v55
    %v404 = vunpack.c.l.b16 %v56
    %v405 = vunpack.c.h.b16 %v56
    %v406 = vunpack.c.l.b16 %v57
    %v407 = vunpack.c.h.b16 %v57
    %v408 = vunpack.c.l.b16 %v58
    %v409 = vunpack.c.h.b16 %v58
    %v410 = vunpack.c.l.b16 %v59
    %v411 = vunpack.c.h.b16 %v59
    %v412 = vunpack.c.l.b16 %v60
    %v413 = vunpack.c.h.b16 %v60
    %v414 = vunpack.c.l.b16 %v61
    %v415 = vunpack.c.h.b16 %v61
    %v416 = vunpack.c.l.b16 %v62
    %v417 = vunpack.c.h.b16 %v62
    %v418 = vunpack.c.l.b16 %v63
    %v419 = vunpack.c.h.b16 %v63
    %v420 = vunpack.c.l.b16 %v64
    %v421 = vunpack.c.h.b16 %v64
    %v422 = vunpack.c.l.b16 %v65
    %v423 = vunpack.c.h.b16 %v65
    %v424 = vunpack.c.l.b16 %v66
    %v425 = vunpack.c.h.b16 %v66
    %v426 = vunpack.c.l.b16 %v67
    %v427 = vunpack.c.h.b16 %v67
    %v428 = vunpack.c.l.b16 %v68
    %v429 = vunpack.c.h.b16 %v68
    %v430 = vunpack.c.l.b16 %v69
    %v431 = vunpack.c.h.b16 %v69
    %v432 = vunpack.c.l.b16 %v70
    %v433 = vunpack.c.h.b16 %v70
    %v434 = vunpack.c.l.b16 %v71
    %v435 = vunpack.c.h.b16 %v71
    %v436 = vunpack.c.l.b16 %v72
    %v437 = vunpack.c.h.b16 %v72
    %v438 = vunpack.c.l.b16 %v73
    %v439 = vunpack.c.h.b16 %v73
    %v440 = vunpack.c.l.b16 %v74
    %v441 = vunpack.c.h.b16 %v74
    %v442 = vunpack.c.l.b16 %v75
    %v443 = vunpack.c.h.b16 %v75
    %v444 = vunpack.c.l.b16 %v76
    %v445 = vunpack.c.h.b16 %v76
    %v446 = vunpack.c.l.b16 %v77
    %v447 = vunpack.c.h.b16 %v77
    %v448 = vunpack.c.l.b16 %v78
    %v449 = vunpack.c.h.b16 %v78
    %v450 = vunpack.c.l.b16 %v79
    %v451 = vunpack.c.h.b16 %v79
    %v452 = vunpack.c.l.b16 %v80
    %v453 = vunpack.c.h.b16 %v80
    %v454 = vunpack.c.l.b16 %v81
    %v455 = vunpack.c.h.b16 %v81
    %v456 = vunpack.c.l.b16 %v82
    %v457 = vunpack.c.h.b16 %v82
    %v458 = vunpack.c.l.b16 %v83
    %v459 = vunpack.c.h.b16 %v83
    %v460 = vunpack.c.l.b16 %v84
    %v461 = vunpack.c.h.b16 %v84
    %v462 = vpack.c.b16 %v402, %v398
    %v463 = vpack.c.b16 %v403, %v399
    %v464 = vpack.c.b16 %v404, %v400
    %v465 = vpack.c.b16 %v405, %v401
    %v466 = vpack.c.b16 %v410, %v406
    %v467 = vpack.c.b16 %v411, %v407
    %v468 = vpack.c.b16 %v412, %v408
    %v469 = vpack.c.b16 %v413, %v409
    %v470 = vpack.c.b16 %v418, %v414
    %v471 = vpack.c.b16 %v419, %v415
    %v472 = vpack.c.b16 %v420, %v416
    %v473 = vpack.c.b16 %v421, %v417
    %v474 = vpack.c.b16 %v426, %v422
    %v475 = vpack.c.b16 %v427, %v423
    %v476 = vpack.c.b16 %v428, %v424
    %v477 = vpack.c.b16 %v429, %v425
    %v478 = vpack.c.b16 %v434, %v430
    %v479 = vpack.c.b16 %v435, %v431
    %v480 = vpack.c.b16 %v436, %v432
    %v481 = vpack.c.b16 %v437, %v433
    %v482 = vpack.c.b16 %v442, %v438
    %v483 = vpack.c.b16 %v443, %v439
    %v484 = vpack.c.b16 %v444, %v440
    %v485 = vpack.c.b16 %v445, %v441
    %v486 = vpack.c.b16 %v450, %v446
    %v487 = vpack.c.b16 %v451, %v447
    %v488 = vpack.c.b16 %v452, %v448
    %v489 = vpack.c.b16 %v453, %v449
    %v490 = vpack.c.b16 %v458, %v454
    %v491 = vpack.c.b16 %v459, %v455
    %v492 = vpack.c.b16 %v460, %v456
    %v493 = vpack.c.b16 %v461, %v457
    %526 = vmatprep.subr.bf16.mxu0 %v463
    %527 = vmatpush1.bf16.msra.mxu0 %v462
    %528 = vmatprep.subr.bf16.mxu0 %v467
    %529 = vmatpush1.bf16.msra.mxu0 %v466
    %530 = vmatprep.subr.bf16.mxu0 %v471
    %531 = vmatpush1.bf16.msra.mxu0 %v470
    %532 = vmatprep.subr.bf16.mxu0 %v475
    %533 = vmatpush1.bf16.msra.mxu0 %v474
    %534 = vmatprep.subr.bf16.mxu0 %v479
    %535 = vmatpush1.bf16.msra.mxu0 %v478
    %536 = vmatprep.subr.bf16.mxu0 %v483
    %537 = vmatpush1.bf16.msra.mxu0 %v482
    %538 = vmatprep.subr.bf16.mxu0 %v487
    %539 = vmatpush1.bf16.msra.mxu0 %v486
    %540 = vmatprep.subr.bf16.mxu0 %v491
    %541 = vmatpush1.bf16.msra.mxu0 %v490
    %542 = vmatprep.subr.bf16.mxu0 0
    %543 = vmatpush1.bf16.msra.mxu0 0
    %544 = vmatprep.subr.bf16.mxu0 0
    %545 = vmatpush1.bf16.msra.mxu0 0
    %546 = vmatprep.subr.bf16.mxu0 0
    %547 = vmatpush1.bf16.msra.mxu0 0
    %548 = vmatprep.subr.bf16.mxu0 0
    %549 = vmatpush1.bf16.msra.mxu0 0
    %550 = vmatprep.subr.bf16.mxu0 0
    %551 = vmatpush1.bf16.msra.mxu0 0
    %552 = vmatprep.subr.bf16.mxu0 0
    %553 = vmatpush1.bf16.msra.mxu0 0
    %554 = vmatprep.subr.bf16.mxu0 0
    %555 = vmatpush1.bf16.msra.mxu0 0
    %556 = vmatprep.subr.bf16.mxu0 0
    %557 = vmatpush1.bf16.msra.mxu0 0
    %558 = vmatprep.mubr.bf16.mxu0 0
    %559 = vmatmul.mubr.bf16.gmra.mrb[0].mxu0 0
    %v560 = vpop.f32.mrb[0].mxu0
    %v561 = vadd.f32 0.0, %v560
    %v562 = vpop.f32.mrb[0].mxu0
    %v563 = vadd.f32 0.0, %v562
    %v564 = vpop.f32.mrb[0].mxu0
    %v565 = vpop.f32.mrb[0].mxu0
    %566 = vdwg.mxu0
    %567 = vmatprep.subr.bf16.mxu0 %v465
    %568 = vmatpush1.bf16.msra.mxu0 %v464
    %569 = vmatprep.subr.bf16.mxu0 %v469
    %570 = vmatpush1.bf16.msra.mxu0 %v468
    %571 = vmatprep.subr.bf16.mxu0 %v473
    %572 = vmatpush1.bf16.msra.mxu0 %v472
    %573 = vmatprep.subr.bf16.mxu0 %v477
    %574 = vmatpush1.bf16.msra.mxu0 %v476
    %575 = vmatprep.subr.bf16.mxu0 %v481
    %576 = vmatpush1.bf16.msra.mxu0 %v480
    %577 = vmatprep.subr.bf16.mxu0 %v485
    %578 = vmatpush1.bf16.msra.mxu0 %v484
    %579 = vmatprep.subr.bf16.mxu0 %v489
    %580 = vmatpush1.bf16.msra.mxu0 %v488
    %581 = vmatprep.subr.bf16.mxu0 %v493
    %582 = vmatpush1.bf16.msra.mxu0 %v492
    %583 = vmatprep.subr.bf16.mxu0 0
    %584 = vmatpush1.bf16.msra.mxu0 0
    %585 = vmatprep.subr.bf16.mxu0 0
    %586 = vmatpush1.bf16.msra.mxu0 0
    %587 = vmatprep.subr.bf16.mxu0 0
    %588 = vmatpush1.bf16.msra.mxu0 0
    %589 = vmatprep.subr.bf16.mxu0 0
    %590 = vmatpush1.bf16.msra.mxu0 0
    %591 = vmatprep.subr.bf16.mxu0 0
    %592 = vmatpush1.bf16.msra.mxu0 0
    %593 = vmatprep.subr.bf16.mxu0 0
    %594 = vmatpush1.bf16.msra.mxu0 0
    %595 = vmatprep.subr.bf16.mxu0 0
    %596 = vmatpush1.bf16.msra.mxu0 0
    %597 = vmatprep.subr.bf16.mxu0 0
    %598 = vmatpush1.bf16.msra.mxu0 0
    %599 = vmatprep.mubr.bf16.mxu0 0
    %600 = vmatmul.mubr.bf16.gmra.mrb[0].mxu0 0
    %v601 = vpop.f32.mrb[0].mxu0
    %v602 = vadd.f32 0.0, %v601
    %v603 = vpop.f32.mrb[0].mxu0
    %v604 = vadd.f32 0.0, %v603
    %v605 = vpop.f32.mrb[0].mxu0
    %v606 = vpop.f32.mrb[0].mxu0
    %607 = vdwg.mxu0
    %v608 = vadd.f32 %v362, %v561
    %v609 = vadd.f32 %v363, %v563
    %v610 = vadd.f32 %v364, %v602
    %v611 = vadd.f32 %v365, %v604
    %v612 = vmul.f32 %v608, 0.5
    %v613 = vmul.f32 %v609, 0.5
    %v614 = vmul.f32 %v610, 0.5
    %v615 = vtanh.pop %v612
    %v616 = vtanh.pop %v613
    %v617 = vtanh.pop %v614
    %v618 = vadd.f32 %v615, 1.0
    %v619 = vadd.f32 %v616, 1.0
    %v620 = vadd.f32 %v617, 1.0
    %v621 = vmul.f32 %v618, 0.5
    %v622 = vmul.f32 %v619, 0.5
    %v623 = vmul.f32 %v620, 0.5
    %v624 = vtanh.pop %v611
    %v625 = vmul.f32 %v622, 0.0
    %v626 = vmul.f32 %v621, %v624
    %v627 = vadd.f32 %v625, %v626
    %v628 = vtanh.pop %v627
    %v629 = vmul.f32 %v623, %v628
    %v630 = vld [vmem:[#allocation2 + $0x20] sm:$0xff]
    %v631 = vld [vmem:[#allocation2 + $0x28] sm:$0xff]
    %v632 = vld [vmem:[#allocation2 + $0x30] sm:$0xff]
    %v633 = vld [vmem:[#allocation2 + $0x38] sm:$0xff]
    %v634 = vpack.c.bf16 %v629, %v629
    %635 = vmatprep.subr.bf16.mxu0 %v463
    %636 = vmatpush1.bf16.msra.mxu0 %v462
    %637 = vmatprep.subr.bf16.mxu0 %v467
    %638 = vmatpush1.bf16.msra.mxu0 %v466
    %639 = vmatprep.subr.bf16.mxu0 %v471
    %640 = vmatpush1.bf16.msra.mxu0 %v470
    %641 = vmatprep.subr.bf16.mxu0 %v475
    %642 = vmatpush1.bf16.msra.mxu0 %v474
    %643 = vmatprep.subr.bf16.mxu0 %v479
    %644 = vmatpush1.bf16.msra.mxu0 %v478
    %645 = vmatprep.subr.bf16.mxu0 %v483
    %646 = vmatpush1.bf16.msra.mxu0 %v482
    %647 = vmatprep.subr.bf16.mxu0 %v487
    %648 = vmatpush1.bf16.msra.mxu0 %v486
    %649 = vmatprep.subr.bf16.mxu0 %v491
    %650 = vmatpush1.bf16.msra.mxu0 %v490
    %651 = vmatprep.subr.bf16.mxu0 0
    %652 = vmatpush1.bf16.msra.mxu0 0
    %653 = vmatprep.subr.bf16.mxu0 0
    %654 = vmatpush1.bf16.msra.mxu0 0
    %655 = vmatprep.subr.bf16.mxu0 0
    %656 = vmatpush1.bf16.msra.mxu0 0
    %657 = vmatprep.subr.bf16.mxu0 0
    %658 = vmatpush1.bf16.msra.mxu0 0
    %659 = vmatprep.subr.bf16.mxu0 0
    %660 = vmatpush1.bf16.msra.mxu0 0
    %661 = vmatprep.subr.bf16.mxu0 0
    %662 = vmatpush1.bf16.msra.mxu0 0
    %663 = vmatprep.subr.bf16.mxu0 0
    %664 = vmatpush1.bf16.msra.mxu0 0
    %665 = vmatprep.subr.bf16.mxu0 0
    %666 = vmatpush1.bf16.msra.mxu0 0
    %667 = vmatprep.mubr.bf16.mxu0 0
    %668 = vmatmul.mubr.bf16.gmra.mrb[0].mxu0 %v634
    %v669 = vpop.f32.mrb[0].mxu0
    %v670 = vadd.f32 0.0, %v669
    %v671 = vpop.f32.mrb[0].mxu0
    %v672 = vadd.f32 0.0, %v671
    %v673 = vpop.f32.mrb[0].mxu0
    %v674 = vpop.f32.mrb[0].mxu0
    %675 = vdwg.mxu0
    %676 = vmatprep.subr.bf16.mxu0 %v465
    %677 = vmatpush1.bf16.msra.mxu0 %v464
    %678 = vmatprep.subr.bf16.mxu0 %v469
    %679 = vmatpush1.bf16.msra.mxu0 %v468
    %680 = vmatprep.subr.bf16.mxu0 %v473
    %681 = vmatpush1.bf16.msra.mxu0 %v472
    %682 = vmatprep.subr.bf16.mxu0 %v477
    %683 = vmatpush1.bf16.msra.mxu0 %v476
    %684 = vmatprep.subr.bf16.mxu0 %v481
    %685 = vmatpush1.bf16.msra.mxu0 %v480
    %686 = vmatprep.subr.bf16.mxu0 %v485
    %687 = vmatpush1.bf16.msra.mxu0 %v484
    %688 = vmatprep.subr.bf16.mxu0 %v489
    %689 = vmatpush1.bf16.msra.mxu0 %v488
    %690 = vmatprep.subr.bf16.mxu0 %v493
    %691 = vmatpush1.bf16.msra.mxu0 %v492
    %692 = vmatprep.subr.bf16.mxu0 0
    %693 = vmatpush1.bf16.msra.mxu0 0
    %694 = vmatprep.subr.bf16.mxu0 0
    %695 = vmatpush1.bf16.msra.mxu0 0
    %696 = vmatprep.subr.bf16.mxu0 0
    %697 = vmatpush1.bf16.msra.mxu0 0
    %698 = vmatprep.subr.bf16.mxu0 0
    %699 = vmatpush1.bf16.msra.mxu0 0
    %700 = vmatprep.subr.bf16.mxu0 0
    %701 = vmatpush1.bf16.msra.mxu0 0
    %702 = vmatprep.subr.bf16.mxu0 0
    %703 = vmatpush1.bf16.msra.mxu0 0
    %704 = vmatprep.subr.bf16.mxu0 0
    %705 = vmatpush1.bf16.msra.mxu0 0
    %706 = vmatprep.subr.bf16.mxu0 0
    %707 = vmatpush1.bf16.msra.mxu0 0
    %708 = vmatprep.mubr.bf16.mxu0 0
    %709 = vmatmul.mubr.bf16.gmra.mrb[0].mxu0 %v634
    %v710 = vpop.f32.mrb[0].mxu0
    %v711 = vadd.f32 0.0, %v710
    %v712 = vpop.f32.mrb[0].mxu0
    %v713 = vadd.f32 0.0, %v712
    %v714 = vpop.f32.mrb[0].mxu0
    %v715 = vpop.f32.mrb[0].mxu0
    %716 = vdwg.mxu0
    %v717 = vadd.f32 %v630, %v670
    %v718 = vadd.f32 %v631, %v672
    %v719 = vadd.f32 %v632, %v711
    %v720 = vadd.f32 %v633, %v713
    %v721 = vmul.f32 %v717, 0.5
    %v722 = vmul.f32 %v718, 0.5
    %v723 = vmul.f32 %v719, 0.5
    %v724 = vtanh.pop %v721
    %v725 = vtanh.pop %v722
    %v726 = vtanh.pop %v723
    %v727 = vadd.f32 %v724, 1.0
    %v728 = vadd.f32 %v725, 1.0
    %v729 = vadd.f32 %v726, 1.0
    %v730 = vmul.f32 %v727, 0.5
    %v731 = vmul.f32 %v728, 0.5
    %v732 = vmul.f32 %v729, 0.5
    %v733 = vtanh.pop %v720
    %v734 = vmul.f32 %v731, %v627
    %v735 = vmul.f32 %v730, %v733
    %v736 = vadd.f32 %v734, %v735
    %v737 = vtanh.pop %v736
    %v738 = vmul.f32 %v732, %v737
    %v739 = vld [vmem:[#allocation2 + $0x40] sm:$0xff]
    %v740 = vld [vmem:[#allocation2 + $0x48] sm:$0xff]
    %v741 = vld [vmem:[#allocation2 + $0x50] sm:$0xff]
    %v742 = vld [vmem:[#allocation2 + $0x58] sm:$0xff]
    %v743 = vpack.c.bf16 %v738, %v738
    %744 = vmatprep.subr.bf16.mxu0 %v463
    %745 = vmatpush1.bf16.msra.mxu0 %v462
    %746 = vmatprep.subr.bf16.mxu0 %v467
    %747 = vmatpush1.bf16.msra.mxu0 %v466
    %748 = vmatprep.subr.bf16.mxu0 %v471
    %749 = vmatpush1.bf16.msra.mxu0 %v470
    %750 = vmatprep.subr.bf16.mxu0 %v475
    %751 = vmatpush1.bf16.msra.mxu0 %v474
    %752 = vmatprep.subr.bf16.mxu0 %v479
    %753 = vmatpush1.bf16.msra.mxu0 %v478
    %754 = vmatprep.subr.bf16.mxu0 %v483
    %755 = vmatpush1.bf16.msra.mxu0 %v482
    %756 = vmatprep.subr.bf16.mxu0 %v487
    %757 = vmatpush1.bf16.msra.mxu0 %v486
    %758 = vmatprep.subr.bf16.mxu0 %v491
    %759 = vmatpush1.bf16.msra.mxu0 %v490
    %760 = vmatprep.subr.bf16.mxu0 0
    %761 = vmatpush1.bf16.msra.mxu0 0
    %762 = vmatprep.subr.bf16.mxu0 0
    %763 = vmatpush1.bf16.msra.mxu0 0
    %764 = vmatprep.subr.bf16.mxu0 0
    %765 = vmatpush1.bf16.msra.mxu0 0
    %766 = vmatprep.subr.bf16.mxu0 0
    %767 = vmatpush1.bf16.msra.mxu0 0
    %768 = vmatprep.subr.bf16.mxu0 0
    %769 = vmatpush1.bf16.msra.mxu0 0
    %770 = vmatprep.subr.bf16.mxu0 0
    %771 = vmatpush1.bf16.msra.mxu0 0
    %772 = vmatprep.subr.bf16.mxu0 0
    %773 = vmatpush1.bf16.msra.mxu0 0
    %774 = vmatprep.subr.bf16.mxu0 0
    %775 = vmatpush1.bf16.msra.mxu0 0
    %776 = vmatprep.mubr.bf16.mxu0 0
    %777 = vmatmul.mubr.bf16.gmra.mrb[0].mxu0 %v743
    %v778 = vpop.f32.mrb[0].mxu0
    %v779 = vadd.f32 0.0, %v778
    %v780 = vpop.f32.mrb[0].mxu0
    %v781 = vadd.f32 0.0, %v780
    %v782 = vpop.f32.mrb[0].mxu0
    %v783 = vpop.f32.mrb[0].mxu0
    %784 = vdwg.mxu0
    %785 = vmatprep.subr.bf16.mxu0 %v465
    %786 = vmatpush1.bf16.msra.mxu0 %v464
    %787 = vmatprep.subr.bf16.mxu0 %v469
    %788 = vmatpush1.bf16.msra.mxu0 %v468
    %789 = vmatprep.subr.bf16.mxu0 %v473
    %790 = vmatpush1.bf16.msra.mxu0 %v472
    %791 = vmatprep.subr.bf16.mxu0 %v477
    %792 = vmatpush1.bf16.msra.mxu0 %v476
    %793 = vmatprep.subr.bf16.mxu0 %v481
    %794 = vmatpush1.bf16.msra.mxu0 %v480
    %795 = vmatprep.subr.bf16.mxu0 %v485
    %796 = vmatpush1.bf16.msra.mxu0 %v484
    %797 = vmatprep.subr.bf16.mxu0 %v489
    %798 = vmatpush1.bf16.msra.mxu0 %v488
    %799 = vmatprep.subr.bf16.mxu0 %v493
    %800 = vmatpush1.bf16.msra.mxu0 %v492
    %801 = vmatprep.subr.bf16.mxu0 0
    %802 = vmatpush1.bf16.msra.mxu0 0
    %803 = vmatprep.subr.bf16.mxu0 0
    %804 = vmatpush1.bf16.msra.mxu0 0
    %805 = vmatprep.subr.bf16.mxu0 0
    %806 = vmatpush1.bf16.msra.mxu0 0
    %807 = vmatprep.subr.bf16.mxu0 0
    %808 = vmatpush1.bf16.msra.mxu0 0
    %809 = vmatprep.subr.bf16.mxu0 0
    %810 = vmatpush1.bf16.msra.mxu0 0
    %811 = vmatprep.subr.bf16.mxu0 0
    %812 = vmatpush1.bf16.msra.mxu0 0
    %813 = vmatprep.subr.bf16.mxu0 0
    %814 = vmatpush1.bf16.msra.mxu0 0
    %815 = vmatprep.subr.bf16.mxu0 0
    %816 = vmatpush1.bf16.msra.mxu0 0
    %817 = vmatprep.mubr.bf16.mxu0 0
    %818 = vmatmul.mubr.bf16.gmra.mrb[0].mxu0 %v743
    %v819 = vpop.f32.mrb[0].mxu0
    %v820 = vadd.f32 0.0, %v819
    %v821 = vpop.f32.mrb[0].mxu0
    %v822 = vadd.f32 0.0, %v821
    %v823 = vpop.f32.mrb[0].mxu0
    %v824 = vpop.f32.mrb[0].mxu0
    %825 = vdwg.mxu0
    %v826 = vadd.f32 %v739, %v779
    %v827 = vadd.f32 %v740, %v781
    %v828 = vadd.f32 %v741, %v820
    %v829 = vadd.f32 %v742, %v822
    %v830 = vmul.f32 %v826, 0.5
    %v831 = vmul.f32 %v827, 0.5
    %v832 = vmul.f32 %v828, 0.5
    %v833 = vtanh.pop %v830
    %v834 = vtanh.pop %v831
    %v835 = vtanh.pop %v832
    %v836 = vadd.f32 %v833, 1.0
    %v837 = vadd.f32 %v834, 1.0
    %v838 = vadd.f32 %v835, 1.0
    %v839 = vmul.f32 %v836, 0.5
    %v840 = vmul.f32 %v837, 0.5
    %v841 = vmul.f32 %v838, 0.5
    %v842 = vtanh.pop %v829
    %v843 = vmul.f32 %v840, %v736
    %v844 = vmul.f32 %v839, %v842
    %v845 = vadd.f32 %v843, %v844
    %v846 = vtanh.pop %v845
    %v847 = vmul.f32 %v841, %v846
    %v848 = vld [vmem:[#allocation2 + $0x60] sm:$0xff]
    %v849 = vld [vmem:[#allocation2 + $0x68] sm:$0xff]
    %v850 = vld [vmem:[#allocation2 + $0x70] sm:$0xff]
    %v851 = vld [vmem:[#allocation2 + $0x78] sm:$0xff]
    %v852 = vpack.c.bf16 %v847, %v847
    %853 = vmatprep.subr.bf16.mxu0 %v463
    %854 = vmatpush1.bf16.msra.mxu0 %v462
    %855 = vmatprep.subr.bf16.mxu0 %v467
    %856 = vmatpush1.bf16.msra.mxu0 %v466
    %857 = vmatprep.subr.bf16.mxu0 %v471
    %858 = vmatpush1.bf16.msra.mxu0 %v470
    %859 = vmatprep.subr.bf16.mxu0 %v475
    %860 = vmatpush1.bf16.msra.mxu0 %v474
    %861 = vmatprep.subr.bf16.mxu0 %v479
    %862 = vmatpush1.bf16.msra.mxu0 %v478
    %863 = vmatprep.subr.bf16.mxu0 %v483
    %864 = vmatpush1.bf16.msra.mxu0 %v482
    %865 = vmatprep.subr.bf16.mxu0 %v487
    %866 = vmatpush1.bf16.msra.mxu0 %v486
    %867 = vmatprep.subr.bf16.mxu0 %v491
    %868 = vmatpush1.bf16.msra.mxu0 %v490
    %869 = vmatprep.subr.bf16.mxu0 0
    %870 = vmatpush1.bf16.msra.mxu0 0
    %871 = vmatprep.subr.bf16.mxu0 0
    %872 = vmatpush1.bf16.msra.mxu0 0
    %873 = vmatprep.subr.bf16.mxu0 0
    %874 = vmatpush1.bf16.msra.mxu0 0
    %875 = vmatprep.subr.bf16.mxu0 0
    %876 = vmatpush1.bf16.msra.mxu0 0
    %877 = vmatprep.subr.bf16.mxu0 0
    %878 = vmatpush1.bf16.msra.mxu0 0
    %879 = vmatprep.subr.bf16.mxu0 0
    %880 = vmatpush1.bf16.msra.mxu0 0
    %881 = vmatprep.subr.bf16.mxu0 0
    %882 = vmatpush1.bf16.msra.mxu0 0
    %883 = vmatprep.subr.bf16.mxu0 0
    %884 = vmatpush1.bf16.msra.mxu0 0
    %885 = vmatprep.mubr.bf16.mxu0 0
    %886 = vmatmul.mubr.bf16.gmra.mrb[0].mxu0 %v852
    %v887 = vpop.f32.mrb[0].mxu0
    %v888 = vadd.f32 0.0, %v887
    %v889 = vpop.f32.mrb[0].mxu0
    %v890 = vadd.f32 0.0, %v889
    %v891 = vpop.f32.mrb[0].mxu0
    %v892 = vpop.f32.mrb[0].mxu0
    %893 = vdwg.mxu0
    %894 = vmatprep.subr.bf16.mxu0 %v465
    %895 = vmatpush1.bf16.msra.mxu0 %v464
    %896 = vmatprep.subr.bf16.mxu0 %v469
    %897 = vmatpush1.bf16.msra.mxu0 %v468
    %898 = vmatprep.subr.bf16.mxu0 %v473
    %899 = vmatpush1.bf16.msra.mxu0 %v472
    %900 = vmatprep.subr.bf16.mxu0 %v477
    %901 = vmatpush1.bf16.msra.mxu0 %v476
    %902 = vmatprep.subr.bf16.mxu0 %v481
    %903 = vmatpush1.bf16.msra.mxu0 %v480
    %904 = vmatprep.subr.bf16.mxu0 %v485
    %905 = vmatpush1.bf16.msra.mxu0 %v484
    %906 = vmatprep.subr.bf16.mxu0 %v489
    %907 = vmatpush1.bf16.msra.mxu0 %v488
    %908 = vmatprep.subr.bf16.mxu0 %v493
    %909 = vmatpush1.bf16.msra.mxu0 %v492
    %910 = vmatprep.subr.bf16.mxu0 0
    %911 = vmatpush1.bf16.msra.mxu0 0
    %912 = vmatprep.subr.bf16.mxu0 0
    %913 = vmatpush1.bf16.msra.mxu0 0
    %914 = vmatprep.subr.bf16.mxu0 0
    %915 = vmatpush1.bf16.msra.mxu0 0
    %916 = vmatprep.subr.bf16.mxu0 0
    %917 = vmatpush1.bf16.msra.mxu0 0
    %918 = vmatprep.subr.bf16.mxu0 0
    %919 = vmatpush1.bf16.msra.mxu0 0
    %920 = vmatprep.subr.bf16.mxu0 0
    %921 = vmatpush1.bf16.msra.mxu0 0
    %922 = vmatprep.subr.bf16.mxu0 0
    %923 = vmatpush1.bf16.msra.mxu0 0
    %924 = vmatprep.subr.bf16.mxu0 0
    %925 = vmatpush1.bf16.msra.mxu0 0
    %926 = vmatprep.mubr.bf16.mxu0 0
    %927 = vmatmul.mubr.bf16.gmra.mrb[0].mxu0 %v852
    %v928 = vpop.f32.mrb[0].mxu0
    %v929 = vadd.f32 0.0, %v928
    %v930 = vpop.f32.mrb[0].mxu0
    %v931 = vadd.f32 0.0, %v930
    %v932 = vpop.f32.mrb[0].mxu0
    %v933 = vpop.f32.mrb[0].mxu0
    %934 = vdwg.mxu0
    %v935 = vadd.f32 %v848, %v888
    %v936 = vadd.f32 %v849, %v890
    %v937 = vadd.f32 %v850, %v929
    %v938 = vadd.f32 %v851, %v931
    %v939 = vmul.f32 %v935, 0.5
    %v940 = vmul.f32 %v936, 0.5
    %v941 = vmul.f32 %v937, 0.5
    %v942 = vtanh.pop %v939
    %v943 = vtanh.pop %v940
    %v944 = vtanh.pop %v941
    %v945 = vadd.f32 %v942, 1.0
    %v946 = vadd.f32 %v943, 1.0
    %v947 = vadd.f32 %v944, 1.0
    %v948 = vmul.f32 %v945, 0.5
    %v949 = vmul.f32 %v946, 0.5
    %v950 = vmul.f32 %v947, 0.5
    %v951 = vtanh.pop %v938
    %v952 = vmul.f32 %v949, %v845
    %v953 = vmul.f32 %v948, %v951
    %v954 = vadd.f32 %v952, %v953
    %v955 = vtanh.pop %v954
    %v956 = vmul.f32 %v950, %v955
    %v957 = vld [vmem:[#allocation2 + $0x80] sm:$0xff]
    %v958 = vld [vmem:[#allocation2 + $0x88] sm:$0xff]
    %v959 = vld [vmem:[#allocation2 + $0x90] sm:$0xff]
    %v960 = vld [vmem:[#allocation2 + $0x98] sm:$0xff]
    %v961 = vpack.c.bf16 %v956, %v956
    %962 = vmatprep.subr.bf16.mxu0 %v463
    %963 = vmatpush1.bf16.msra.mxu0 %v462
    %964 = vmatprep.subr.bf16.mxu0 %v467
    %965 = vmatpush1.bf16.msra.mxu0 %v466
    %966 = vmatprep.subr.bf16.mxu0 %v471
    %967 = vmatpush1.bf16.msra.mxu0 %v470
    %968 = vmatprep.subr.bf16.mxu0 %v475
    %969 = vmatpush1.bf16.msra.mxu0 %v474
    %970 = vmatprep.subr.bf16.mxu0 %v479
    %971 = vmatpush1.bf16.msra.mxu0 %v478
    %972 = vmatprep.subr.bf16.mxu0 %v483
    %973 = vmatpush1.bf16.msra.mxu0 %v482
    %974 = vmatprep.subr.bf16.mxu0 %v487
    %975 = vmatpush1.bf16.msra.mxu0 %v486
    %976 = vmatprep.subr.bf16.mxu0 %v491
    %977 = vmatpush1.bf16.msra.mxu0 %v490
    %978 = vmatprep.subr.bf16.mxu0 0
    %979 = vmatpush1.bf16.msra.mxu0 0
    %980 = vmatprep.subr.bf16.mxu0 0
    %981 = vmatpush1.bf16.msra.mxu0 0
    %982 = vmatprep.subr.bf16.mxu0 0
    %983 = vmatpush1.bf16.msra.mxu0 0
    %984 = vmatprep.subr.bf16.mxu0 0
    %985 = vmatpush1.bf16.msra.mxu0 0
    %986 = vmatprep.subr.bf16.mxu0 0
    %987 = vmatpush1.bf16.msra.mxu0 0
    %988 = vmatprep.subr.bf16.mxu0 0
    %989 = vmatpush1.bf16.msra.mxu0 0
    %990 = vmatprep.subr.bf16.mxu0 0
    %991 = vmatpush1.bf16.msra.mxu0 0
    %992 = vmatprep.subr.bf16.mxu0 0
    %993 = vmatpush1.bf16.msra.mxu0 0
    %994 = vmatprep.mubr.bf16.mxu0 0
    %995 = vmatmul.mubr.bf16.gmra.mrb[0].mxu0 %v961
    %v996 = vpop.f32.mrb[0].mxu0
    %v997 = vadd.f32 0.0, %v996
    %v998 = vpop.f32.mrb[0].mxu0
    %v999 = vadd.f32 0.0, %v998
    %v1000 = vpop.f32.mrb[0].mxu0
    %v1001 = vpop.f32.mrb[0].mxu0
    %1002 = vdwg.mxu0
    %1003 = vmatprep.subr.bf16.mxu0 %v465
    %1004 = vmatpush1.bf16.msra.mxu0 %v464
    %1005 = vmatprep.subr.bf16.mxu0 %v469
    %1006 = vmatpush1.bf16.msra.mxu0 %v468
    %1007 = vmatprep.subr.bf16.mxu0 %v473
    %1008 = vmatpush1.bf16.msra.mxu0 %v472
    %1009 = vmatprep.subr.bf16.mxu0 %v477
    %1010 = vmatpush1.bf16.msra.mxu0 %v476
    %1011 = vmatprep.subr.bf16.mxu0 %v481
    %1012 = vmatpush1.bf16.msra.mxu0 %v480
    %1013 = vmatprep.subr.bf16.mxu0 %v485
    %1014 = vmatpush1.bf16.msra.mxu0 %v484
    %1015 = vmatprep.subr.bf16.mxu0 %v489
    %1016 = vmatpush1.bf16.msra.mxu0 %v488
    %1017 = vmatprep.subr.bf16.mxu0 %v493
    %1018 = vmatpush1.bf16.msra.mxu0 %v492
    %1019 = vmatprep.subr.bf16.mxu0 0
    %1020 = vmatpush1.bf16.msra.mxu0 0
    %1021 = vmatprep.subr.bf16.mxu0 0
    %1022 = vmatpush1.bf16.msra.mxu0 0
    %1023 = vmatprep.subr.bf16.mxu0 0
    %1024 = vmatpush1.bf16.msra.mxu0 0
    %1025 = vmatprep.subr.bf16.mxu0 0
    %1026 = vmatpush1.bf16.msra.mxu0 0
    %1027 = vmatprep.subr.bf16.mxu0 0
    %1028 = vmatpush1.bf16.msra.mxu0 0
    %1029 = vmatprep.subr.bf16.mxu0 0
    %1030 = vmatpush1.bf16.msra.mxu0 0
    %1031 = vmatprep.subr.bf16.mxu0 0
    %1032 = vmatpush1.bf16.msra.mxu0 0
    %1033 = vmatprep.subr.bf16.mxu0 0
    %1034 = vmatpush1.bf16.msra.mxu0 0
    %1035 = vmatprep.mubr.bf16.mxu0 0
    %1036 = vmatmul.mubr.bf16.gmra.mrb[0].mxu0 %v961
    %v1037 = vpop.f32.mrb[0].mxu0
    %v1038 = vadd.f32 0.0, %v1037
    %v1039 = vpop.f32.mrb[0].mxu0
    %v1040 = vadd.f32 0.0, %v1039
    %v1041 = vpop.f32.mrb[0].mxu0
    %v1042 = vpop.f32.mrb[0].mxu0
    %1043 = vdwg.mxu0
    %v1044 = vadd.f32 %v957, %v997
    %v1045 = vadd.f32 %v958, %v999
    %v1046 = vadd.f32 %v959, %v1038
    %v1047 = vadd.f32 %v960, %v1040
    %v1048 = vmul.f32 %v1044, 0.5
    %v1049 = vmul.f32 %v1045, 0.5
    %v1050 = vmul.f32 %v1046, 0.5
    %v1051 = vtanh.pop %v1048
    %v1052 = vtanh.pop %v1049
    %v1053 = vtanh.pop %v1050
    %v1054 = vadd.f32 %v1051, 1.0
    %v1055 = vadd.f32 %v1052, 1.0
    %v1056 = vadd.f32 %v1053, 1.0
    %v1057 = vmul.f32 %v1054, 0.5
    %v1058 = vmul.f32 %v1055, 0.5
    %v1059 = vmul.f32 %v1056, 0.5
    %v1060 = vtanh.pop %v1047
    %v1061 = vmul.f32 %v1058, %v954
    %v1062 = vmul.f32 %v1057, %v1060
    %v1063 = vadd.f32 %v1061, %v1062
    %v1064 = vtanh.pop %v1063
    %v1065 = vmul.f32 %v1059, %v1064
    %v1066 = vld [vmem:[#allocation2 + $0xa0] sm:$0xff]
    %v1067 = vld [vmem:[#allocation2 + $0xa8] sm:$0xff]
    %v1068 = vld [vmem:[#allocation2 + $0xb0] sm:$0xff]
    %v1069 = vld [vmem:[#allocation2 + $0xb8] sm:$0xff]
    %v1070 = vpack.c.bf16 %v1065, %v1065
    %1071 = vmatprep.subr.bf16.mxu0 %v463
    %1072 = vmatpush1.bf16.msra.mxu0 %v462
    %1073 = vmatprep.subr.bf16.mxu0 %v467
    %1074 = vmatpush1.bf16.msra.mxu0 %v466
    %1075 = vmatprep.subr.bf16.mxu0 %v471
    %1076 = vmatpush1.bf16.msra.mxu0 %v470
    %1077 = vmatprep.subr.bf16.mxu0 %v475
    %1078 = vmatpush1.bf16.msra.mxu0 %v474
    %1079 = vmatprep.subr.bf16.mxu0 %v479
    %1080 = vmatpush1.bf16.msra.mxu0 %v478
    %1081 = vmatprep.subr.bf16.mxu0 %v483
    %1082 = vmatpush1.bf16.msra.mxu0 %v482
    %1083 = vmatprep.subr.bf16.mxu0 %v487
    %1084 = vmatpush1.bf16.msra.mxu0 %v486
    %1085 = vmatprep.subr.bf16.mxu0 %v491
    %1086 = vmatpush1.bf16.msra.mxu0 %v490
    %1087 = vmatprep.subr.bf16.mxu0 0
    %1088 = vmatpush1.bf16.msra.mxu0 0
    %1089 = vmatprep.subr.bf16.mxu0 0
    %1090 = vmatpush1.bf16.msra.mxu0 0
    %1091 = vmatprep.subr.bf16.mxu0 0
    %1092 = vmatpush1.bf16.msra.mxu0 0
    %1093 = vmatprep.subr.bf16.mxu0 0
    %1094 = vmatpush1.bf16.msra.mxu0 0
    %1095 = vmatprep.subr.bf16.mxu0 0
    %1096 = vmatpush1.bf16.msra.mxu0 0
    %1097 = vmatprep.subr.bf16.mxu0 0
    %1098 = vmatpush1.bf16.msra.mxu0 0
    %1099 = vmatprep.subr.bf16.mxu0 0
    %1100 = vmatpush1.bf16.msra.mxu0 0
    %1101 = vmatprep.subr.bf16.mxu0 0
    %1102 = vmatpush1.bf16.msra.mxu0 0
    %1103 = vmatprep.mubr.bf16.mxu0 0
    %1104 = vmatmul.mubr.bf16.gmra.mrb[0].mxu0 %v1070
    %v1105 = vpop.f32.mrb[0].mxu0
    %v1106 = vadd.f32 0.0, %v1105
    %v1107 = vpop.f32.mrb[0].mxu0
    %v1108 = vadd.f32 0.0, %v1107
    %v1109 = vpop.f32.mrb[0].mxu0
    %v1110 = vpop.f32.mrb[0].mxu0
    %1111 = vdwg.mxu0
    %1112 = vmatprep.subr.bf16.mxu0 %v465
    %1113 = vmatpush1.bf16.msra.mxu0 %v464
    %1114 = vmatprep.subr.bf16.mxu0 %v469
    %1115 = vmatpush1.bf16.msra.mxu0 %v468
    %1116 = vmatprep.subr.bf16.mxu0 %v473
    %1117 = vmatpush1.bf16.msra.mxu0 %v472
    %1118 = vmatprep.subr.bf16.mxu0 %v477
    %1119 = vmatpush1.bf16.msra.mxu0 %v476
    %1120 = vmatprep.subr.bf16.mxu0 %v481
    %1121 = vmatpush1.bf16.msra.mxu0 %v480
    %1122 = vmatprep.subr.bf16.mxu0 %v485
    %1123 = vmatpush1.bf16.msra.mxu0 %v484
    %1124 = vmatprep.subr.bf16.mxu0 %v489
    %1125 = vmatpush1.bf16.msra.mxu0 %v488
    %1126 = vmatprep.subr.bf16.mxu0 %v493
    %1127 = vmatpush1.bf16.msra.mxu0 %v492
    %1128 = vmatprep.subr.bf16.mxu0 0
    %1129 = vmatpush1.bf16.msra.mxu0 0
    %1130 = vmatprep.subr.bf16.mxu0 0
    %1131 = vmatpush1.bf16.msra.mxu0 0
    %1132 = vmatprep.subr.bf16.mxu0 0
    %1133 = vmatpush1.bf16.msra.mxu0 0
    %1134 = vmatprep.subr.bf16.mxu0 0
    %1135 = vmatpush1.bf16.msra.mxu0 0
    %1136 = vmatprep.subr.bf16.mxu0 0
    %1137 = vmatpush1.bf16.msra.mxu0 0
    %1138 = vmatprep.subr.bf16.mxu0 0
    %1139 = vmatpush1.bf16.msra.mxu0 0
    %1140 = vmatprep.subr.bf16.mxu0 0
    %1141 = vmatpush1.bf16.msra.mxu0 0
    %1142 = vmatprep.subr.bf16.mxu0 0
    %1143 = vmatpush1.bf16.msra.mxu0 0
    %1144 = vmatprep.mubr.bf16.mxu0 0
    %1145 = vmatmul.mubr.bf16.gmra.mrb[0].mxu0 %v1070
    %v1146 = vpop.f32.mrb[0].mxu0
    %v1147 = vadd.f32 0.0, %v1146
    %v1148 = vpop.f32.mrb[0].mxu0
    %v1149 = vadd.f32 0.0, %v1148
    %v1150 = vpop.f32.mrb[0].mxu0
    %v1151 = vpop.f32.mrb[0].mxu0
    %1152 = vdwg.mxu0
    %v1153 = vadd.f32 %v1066, %v1106
    %v1154 = vadd.f32 %v1067, %v1108
    %v1155 = vadd.f32 %v1068, %v1147
    %v1156 = vadd.f32 %v1069, %v1149
    %v1157 = vmul.f32 %v1153, 0.5
    %v1158 = vmul.f32 %v1154, 0.5
    %v1159 = vmul.f32 %v1155, 0.5
    %v1160 = vtanh.pop %v1157
    %v1161 = vtanh.pop %v1158
    %v1162 = vtanh.pop %v1159
    %v1163 = vadd.f32 %v1160, 1.0
    %v1164 = vadd.f32 %v1161, 1.0
    %v1165 = vadd.f32 %v1162, 1.0
    %v1166 = vmul.f32 %v1163, 0.5
    %v1167 = vmul.f32 %v1164, 0.5
    %v1168 = vmul.f32 %v1165, 0.5
    %v1169 = vtanh.pop %v1156
    %v1170 = vmul.f32 %v1167, %v1063
    %v1171 = vmul.f32 %v1166, %v1169
    %v1172 = vadd.f32 %v1170, %v1171
    %v1173 = vtanh.pop %v1172
    %v1174 = vmul.f32 %v1168, %v1173
    %v1175 = vld [vmem:[#allocation2 + $0xc0] sm:$0xff]
    %v1176 = vld [vmem:[#allocation2 + $0xc8] sm:$0xff]
    %v1177 = vld [vmem:[#allocation2 + $0xd0] sm:$0xff]
    %v1178 = vld [vmem:[#allocation2 + $0xd8] sm:$0xff]
    %v1179 = vpack.c.bf16 %v1174, %v1174
    %1180 = vmatprep.subr.bf16.mxu0 %v463
    %1181 = vmatpush1.bf16.msra.mxu0 %v462
    %1182 = vmatprep.subr.bf16.mxu0 %v467
    %1183 = vmatpush1.bf16.msra.mxu0 %v466
    %1184 = vmatprep.subr.bf16.mxu0 %v471
    %1185 = vmatpush1.bf16.msra.mxu0 %v470
    %1186 = vmatprep.subr.bf16.mxu0 %v475
    %1187 = vmatpush1.bf16.msra.mxu0 %v474
    %1188 = vmatprep.subr.bf16.mxu0 %v479
    %1189 = vmatpush1.bf16.msra.mxu0 %v478
    %1190 = vmatprep.subr.bf16.mxu0 %v483
    %1191 = vmatpush1.bf16.msra.mxu0 %v482
    %1192 = vmatprep.subr.bf16.mxu0 %v487
    %1193 = vmatpush1.bf16.msra.mxu0 %v486
    %1194 = vmatprep.subr.bf16.mxu0 %v491
    %1195 = vmatpush1.bf16.msra.mxu0 %v490
    %1196 = vmatprep.subr.bf16.mxu0 0
    %1197 = vmatpush1.bf16.msra.mxu0 0
    %1198 = vmatprep.subr.bf16.mxu0 0
    %1199 = vmatpush1.bf16.msra.mxu0 0
    %1200 = vmatprep.subr.bf16.mxu0 0
    %1201 = vmatpush1.bf16.msra.mxu0 0
    %1202 = vmatprep.subr.bf16.mxu0 0
    %1203 = vmatpush1.bf16.msra.mxu0 0
    %1204 = vmatprep.subr.bf16.mxu0 0
    %1205 = vmatpush1.bf16.msra.mxu0 0
    %1206 = vmatprep.subr.bf16.mxu0 0
    %1207 = vmatpush1.bf16.msra.mxu0 0
    %1208 = vmatprep.subr.bf16.mxu0 0
    %1209 = vmatpush1.bf16.msra.mxu0 0
    %1210 = vmatprep.subr.bf16.mxu0 0
    %1211 = vmatpush1.bf16.msra.mxu0 0
    %1212 = vmatprep.mubr.bf16.mxu0 0
    %1213 = vmatmul.mubr.bf16.gmra.mrb[0].mxu0 %v1179
    %v1214 = vpop.f32.mrb[0].mxu0
    %v1215 = vadd.f32 0.0, %v1214
    %v1216 = vpop.f32.mrb[0].mxu0
    %v1217 = vadd.f32 0.0, %v1216
    %v1218 = vpop.f32.mrb[0].mxu0
    %v1219 = vpop.f32.mrb[0].mxu0
    %1220 = vdwg.mxu0
    %1221 = vmatprep.subr.bf16.mxu0 %v465
    %1222 = vmatpush1.bf16.msra.mxu0 %v464
    %1223 = vmatprep.subr.bf16.mxu0 %v469
    %1224 = vmatpush1.bf16.msra.mxu0 %v468
    %1225 = vmatprep.subr.bf16.mxu0 %v473
    %1226 = vmatpush1.bf16.msra.mxu0 %v472
    %1227 = vmatprep.subr.bf16.mxu0 %v477
    %1228 = vmatpush1.bf16.msra.mxu0 %v476
    %1229 = vmatprep.subr.bf16.mxu0 %v481
    %1230 = vmatpush1.bf16.msra.mxu0 %v480
    %1231 = vmatprep.subr.bf16.mxu0 %v485
    %1232 = vmatpush1.bf16.msra.mxu0 %v484
    %1233 = vmatprep.subr.bf16.mxu0 %v489
    %1234 = vmatpush1.bf16.msra.mxu0 %v488
    %1235 = vmatprep.subr.bf16.mxu0 %v493
    %1236 = vmatpush1.bf16.msra.mxu0 %v492
    %1237 = vmatprep.subr.bf16.mxu0 0
    %1238 = vmatpush1.bf16.msra.mxu0 0
    %1239 = vmatprep.subr.bf16.mxu0 0
    %1240 = vmatpush1.bf16.msra.mxu0 0
    %1241 = vmatprep.subr.bf16.mxu0 0
    %1242 = vmatpush1.bf16.msra.mxu0 0
    %1243 = vmatprep.subr.bf16.mxu0 0
    %1244 = vmatpush1.bf16.msra.mxu0 0
    %1245 = vmatprep.subr.bf16.mxu0 0
    %1246 = vmatpush1.bf16.msra.mxu0 0
    %1247 = vmatprep.subr.bf16.mxu0 0
    %1248 = vmatpush1.bf16.msra.mxu0 0
    %1249 = vmatprep.subr.bf16.mxu0 0
    %1250 = vmatpush1.bf16.msra.mxu0 0
    %1251 = vmatprep.subr.bf16.mxu0 0
    %1252 = vmatpush1.bf16.msra.mxu0 0
    %1253 = vmatprep.mubr.bf16.mxu0 0
    %1254 = vmatmul.mubr.bf16.gmra.mrb[0].mxu0 %v1179
    %v1255 = vpop.f32.mrb[0].mxu0
    %v1256 = vadd.f32 0.0, %v1255
    %v1257 = vpop.f32.mrb[0].mxu0
    %v1258 = vadd.f32 0.0, %v1257
    %v1259 = vpop.f32.mrb[0].mxu0
    %v1260 = vpop.f32.mrb[0].mxu0
    %1261 = vdwg.mxu0
    %v1262 = vadd.f32 %v1175, %v1215
    %v1263 = vadd.f32 %v1176, %v1217
    %v1264 = vadd.f32 %v1177, %v1256
    %v1265 = vadd.f32 %v1178, %v1258
    %v1266 = vmul.f32 %v1262, 0.5
    %v1267 = vmul.f32 %v1263, 0.5
    %v1268 = vmul.f32 %v1264, 0.5
    %v1269 = vtanh.pop %v1266
    %v1270 = vtanh.pop %v1267
    %v1271 = vtanh.pop %v1268
    %v1272 = vadd.f32 %v1269, 1.0
    %v1273 = vadd.f32 %v1270, 1.0
    %v1274 = vadd.f32 %v1271, 1.0
    %v1275 = vmul.f32 %v1272, 0.5
    %v1276 = vmul.f32 %v1273, 0.5
    %v1277 = vmul.f32 %v1274, 0.5
    %v1278 = vtanh.pop %v1265
    %v1279 = vmul.f32 %v1276, %v1172
    %v1280 = vmul.f32 %v1275, %v1278
    %v1281 = vadd.f32 %v1279, %v1280
    %v1282 = vtanh.pop %v1281
    %v1283 = vmul.f32 %v1277, %v1282
    %v1284 = vld [vmem:[#allocation2 + $0xe0] sm:$0xff]
    %v1285 = vld [vmem:[#allocation2 + $0xe8] sm:$0xff]
    %v1286 = vld [vmem:[#allocation2 + $0xf0] sm:$0xff]
    %v1287 = vld [vmem:[#allocation2 + $0xf8] sm:$0xff]
    %v1288 = vpack.c.bf16 %v1283, %v1283
    %1289 = vmatprep.subr.bf16.mxu0 %v463
    %1290 = vmatpush1.bf16.msra.mxu0 %v462
    %1291 = vmatprep.subr.bf16.mxu0 %v467
    %1292 = vmatpush1.bf16.msra.mxu0 %v466
    %1293 = vmatprep.subr.bf16.mxu0 %v471
    %1294 = vmatpush1.bf16.msra.mxu0 %v470
    %1295 = vmatprep.subr.bf16.mxu0 %v475
    %1296 = vmatpush1.bf16.msra.mxu0 %v474
    %1297 = vmatprep.subr.bf16.mxu0 %v479
    %1298 = vmatpush1.bf16.msra.mxu0 %v478
    %1299 = vmatprep.subr.bf16.mxu0 %v483
    %1300 = vmatpush1.bf16.msra.mxu0 %v482
    %1301 = vmatprep.subr.bf16.mxu0 %v487
    %1302 = vmatpush1.bf16.msra.mxu0 %v486
    %1303 = vmatprep.subr.bf16.mxu0 %v491
    %1304 = vmatpush1.bf16.msra.mxu0 %v490
    %1305 = vmatprep.subr.bf16.mxu0 0
    %1306 = vmatpush1.bf16.msra.mxu0 0
    %1307 = vmatprep.subr.bf16.mxu0 0
    %1308 = vmatpush1.bf16.msra.mxu0 0
    %1309 = vmatprep.subr.bf16.mxu0 0
    %1310 = vmatpush1.bf16.msra.mxu0 0
    %1311 = vmatprep.subr.bf16.mxu0 0
    %1312 = vmatpush1.bf16.msra.mxu0 0
    %1313 = vmatprep.subr.bf16.mxu0 0
    %1314 = vmatpush1.bf16.msra.mxu0 0
    %1315 = vmatprep.subr.bf16.mxu0 0
    %1316 = vmatpush1.bf16.msra.mxu0 0
    %1317 = vmatprep.subr.bf16.mxu0 0
    %1318 = vmatpush1.bf16.msra.mxu0 0
    %1319 = vmatprep.subr.bf16.mxu0 0
    %1320 = vmatpush1.bf16.msra.mxu0 0
    %1321 = vmatprep.mubr.bf16.mxu0 0
    %1322 = vmatmul.mubr.bf16.gmra.mrb[0].mxu0 %v1288
    %v1323 = vpop.f32.mrb[0].mxu0
    %v1324 = vadd.f32 0.0, %v1323
    %v1325 = vpop.f32.mrb[0].mxu0
    %v1326 = vadd.f32 0.0, %v1325
    %v1327 = vpop.f32.mrb[0].mxu0
    %v1328 = vpop.f32.mrb[0].mxu0
    %1329 = vdwg.mxu0
    %1330 = vmatprep.subr.bf16.mxu0 %v465
    %1331 = vmatpush1.bf16.msra.mxu0 %v464
    %1332 = vmatprep.subr.bf16.mxu0 %v469
    %1333 = vmatpush1.bf16.msra.mxu0 %v468
    %1334 = vmatprep.subr.bf16.mxu0 %v473
    %1335 = vmatpush1.bf16.msra.mxu0 %v472
    %1336 = vmatprep.subr.bf16.mxu0 %v477
    %1337 = vmatpush1.bf16.msra.mxu0 %v476
    %1338 = vmatprep.subr.bf16.mxu0 %v481
    %1339 = vmatpush1.bf16.msra.mxu0 %v480
    %1340 = vmatprep.subr.bf16.mxu0 %v485
    %1341 = vmatpush1.bf16.msra.mxu0 %v484
    %1342 = vmatprep.subr.bf16.mxu0 %v489
    %1343 = vmatpush1.bf16.msra.mxu0 %v488
    %1344 = vmatprep.subr.bf16.mxu0 %v493
    %1345 = vmatpush1.bf16.msra.mxu0 %v492
    %1346 = vmatprep.subr.bf16.mxu0 0
    %1347 = vmatpush1.bf16.msra.mxu0 0
    %1348 = vmatprep.subr.bf16.mxu0 0
    %1349 = vmatpush1.bf16.msra.mxu0 0
    %1350 = vmatprep.subr.bf16.mxu0 0
    %1351 = vmatpush1.bf16.msra.mxu0 0
    %1352 = vmatprep.subr.bf16.mxu0 0
    %1353 = vmatpush1.bf16.msra.mxu0 0
    %1354 = vmatprep.subr.bf16.mxu0 0
    %1355 = vmatpush1.bf16.msra.mxu0 0
    %1356 = vmatprep.subr.bf16.mxu0 0
    %1357 = vmatpush1.bf16.msra.mxu0 0
    %1358 = vmatprep.subr.bf16.mxu0 0
    %1359 = vmatpush1.bf16.msra.mxu0 0
    %1360 = vmatprep.subr.bf16.mxu0 0
    %1361 = vmatpush1.bf16.msra.mxu0 0
    %1362 = vmatprep.mubr.bf16.mxu0 0
    %1363 = vmatmul.mubr.bf16.gmra.mrb[0].mxu0 %v1288
    %v1364 = vpop.f32.mrb[0].mxu0
    %v1365 = vadd.f32 0.0, %v1364
    %v1366 = vpop.f32.mrb[0].mxu0
    %v1367 = vadd.f32 0.0, %v1366
    %v1368 = vpop.f32.mrb[0].mxu0
    %v1369 = vpop.f32.mrb[0].mxu0
    %1370 = vdwg.mxu0
    %v1371 = vadd.f32 %v1284, %v1324
    %v1372 = vadd.f32 %v1285, %v1326
    %v1373 = vadd.f32 %v1286, %v1365
    %v1374 = vadd.f32 %v1287, %v1367
    %v1375 = vmul.f32 %v1371, 0.5
    %v1376 = vmul.f32 %v1372, 0.5
    %v1377 = vmul.f32 %v1373, 0.5
    %v1378 = vtanh.pop %v1375
    %v1379 = vtanh.pop %v1376
    %v1380 = vtanh.pop %v1377
    %v1381 = vadd.f32 %v1378, 1.0
    %v1382 = vadd.f32 %v1379, 1.0
    %v1383 = vadd.f32 %v1380, 1.0
    %v1384 = vmul.f32 %v1381, 0.5
    %v1385 = vmul.f32 %v1382, 0.5
    %v1386 = vmul.f32 %v1383, 0.5
    %v1387 = vtanh.pop %v1374
    %v1388 = vmul.f32 %v1385, %v1281
    %v1389 = vmul.f32 %v1384, %v1387
    %v1390 = vadd.f32 %v1388, %v1389
    %v1391 = vtanh.pop %v1390
    %v1392 = vmul.f32 %v1386, %v1391
    %v1393 = vpack.c.bf16 %v1392, %v1392
    %v1394 = vld [vmem:[#allocation6] sm:$0xf]
    %v1395 = vld [vmem:[#allocation6 + $0x4] sm:$0xf]
    %v1396 = vld [vmem:[#allocation6 + $0x8] sm:$0xf]
    %v1397 = vld [vmem:[#allocation6 + $0xc] sm:$0xf]
    %v1398 = vld [vmem:[#allocation6 + $0x10] sm:$0xf]
    %v1399 = vld [vmem:[#allocation6 + $0x14] sm:$0xf]
    %v1400 = vld [vmem:[#allocation6 + $0x18] sm:$0xf]
    %v1401 = vld [vmem:[#allocation6 + $0x1c] sm:$0xf]
    %v1402 = vld [vmem:[#allocation6 + $0x20] sm:$0xf]
    %v1403 = vld [vmem:[#allocation6 + $0x24] sm:$0xf]
    %v1404 = vld [vmem:[#allocation6 + $0x28] sm:$0xf]
    %v1405 = vld [vmem:[#allocation6 + $0x2c] sm:$0xf]
    %v1406 = vld [vmem:[#allocation6 + $0x30] sm:$0xf]
    %v1407 = vld [vmem:[#allocation6 + $0x34] sm:$0xf]
    %v1408 = vld [vmem:[#allocation6 + $0x38] sm:$0xf]
    %v1409 = vld [vmem:[#allocation6 + $0x3c] sm:$0xf]
    %v1410 = vld [vmem:[%s5] sm:$0x1]
    %v1412 = vlaneseq
    %v1413 = vshrl.u32 %v1412, 7
    %v1414 = vsub.s32 0, %v1413
    %v1415 = vrot.slane %v1410, %v1414
    %v1433 = vunpack.c.l.b16 %v1394
    %v1434 = vunpack.c.l.b16 %v1395
    %v1435 = vunpack.c.l.b16 %v1396
    %v1436 = vunpack.c.l.b16 %v1397
    %v1437 = vunpack.c.l.b16 %v1398
    %v1438 = vunpack.c.l.b16 %v1399
    %v1439 = vunpack.c.l.b16 %v1400
    %v1440 = vunpack.c.l.b16 %v1401
    %v1441 = vunpack.c.l.b16 %v1402
    %v1442 = vunpack.c.l.b16 %v1403
    %v1443 = vunpack.c.l.b16 %v1404
    %v1444 = vunpack.c.l.b16 %v1405
    %v1445 = vunpack.c.l.b16 %v1406
    %v1446 = vunpack.c.l.b16 %v1407
    %v1447 = vunpack.c.l.b16 %v1408
    %v1448 = vunpack.c.l.b16 %v1409
    %v1449 = vpack.c.b16 %v1434, %v1433
    %v1450 = vpack.c.b16 %v1436, %v1435
    %v1451 = vpack.c.b16 %v1438, %v1437
    %v1452 = vpack.c.b16 %v1440, %v1439
    %v1453 = vpack.c.b16 %v1442, %v1441
    %v1454 = vpack.c.b16 %v1444, %v1443
    %v1455 = vpack.c.b16 %v1446, %v1445
    %v1456 = vpack.c.b16 %v1448, %v1447
    %1465 = vmatprep.subr.bf16.mxu0 0
    %1466 = vmatpush1.bf16.msra.mxu0 %v1449
    %1467 = vmatprep.subr.bf16.mxu0 0
    %1468 = vmatpush1.bf16.msra.mxu0 %v1450
    %1469 = vmatprep.subr.bf16.mxu0 0
    %1470 = vmatpush1.bf16.msra.mxu0 %v1451
    %1471 = vmatprep.subr.bf16.mxu0 0
    %1472 = vmatpush1.bf16.msra.mxu0 %v1452
    %1473 = vmatprep.subr.bf16.mxu0 0
    %1474 = vmatpush1.bf16.msra.mxu0 %v1453
    %1475 = vmatprep.subr.bf16.mxu0 0
    %1476 = vmatpush1.bf16.msra.mxu0 %v1454
    %1477 = vmatprep.subr.bf16.mxu0 0
    %1478 = vmatpush1.bf16.msra.mxu0 %v1455
    %1479 = vmatprep.subr.bf16.mxu0 0
    %1480 = vmatpush1.bf16.msra.mxu0 %v1456
    %1481 = vmatprep.subr.bf16.mxu0 0
    %1482 = vmatpush1.bf16.msra.mxu0 0
    %1483 = vmatprep.subr.bf16.mxu0 0
    %1484 = vmatpush1.bf16.msra.mxu0 0
    %1485 = vmatprep.subr.bf16.mxu0 0
    %1486 = vmatpush1.bf16.msra.mxu0 0
    %1487 = vmatprep.subr.bf16.mxu0 0
    %1488 = vmatpush1.bf16.msra.mxu0 0
    %1489 = vmatprep.subr.bf16.mxu0 0
    %1490 = vmatpush1.bf16.msra.mxu0 0
    %1491 = vmatprep.subr.bf16.mxu0 0
    %1492 = vmatpush1.bf16.msra.mxu0 0
    %1493 = vmatprep.subr.bf16.mxu0 0
    %1494 = vmatpush1.bf16.msra.mxu0 0
    %1495 = vmatprep.subr.bf16.mxu0 0
    %1496 = vmatpush1.bf16.msra.mxu0 0
    %1497 = vmatprep.mubr.bf16.mxu0 0
    %1498 = vmatmul.mubr.bf16.gmra.mrb[0].mxu0 %v1393
    %v1499 = vpop.f32.mrb[0].mxu0
    %v1500 = vadd.f32 %v1415, %v1499
    %v1501 = vpop.f32.mrb[0].mxu0
    %v1502 = vpop.f32.mrb[0].mxu0
    %v1503 = vpop.f32.mrb[0].mxu0
    %1504 = vdwg.mxu0
    %v1505 = vmul.f32 %v1500, 0.5
    %v1506 = vtanh.pop %v1505
    %v1507 = vadd.f32 %v1506, 1.0
    %v1508 = vmul.f32 %v1507, 0.5
    %1509 = vst [vmem:[#allocation8] sm:$0xff] %v1508
    // Predicated region
    $region34: #{tpu_custom_call.1} parent=1 // pred_check
      _
    $region35: #{tpu_custom_call.1} parent=1 // pred_check_branch
      %1511 = sbr.rel (0) target = $region37
    $region36: #{tpu_custom_call.1} parent=1 // pred_region
      %s1513 = ssub.s32 128, 128
      %1514 = vsyncadd [#allocation5], %s1513
      %s1516 = sshll.u32 [#allocation8], 4
      %s1517 = int_to_ptr.vmem [resolvable:$true] %s1516
      %1519 = dma.vmem_to_hbm [thread:$0]  %s1517, 128, %s6, [#allocation5]
    $region37: #{tpu_custom_call.1} parent=1 // pred_fallthru
      _
    // Predicated region
    $region38: #{tpu_custom_call.1} parent=1 // pred_check
      _
    $region39: #{tpu_custom_call.1} parent=1 // pred_check_branch
      %1521 = sbr.rel (0) target = $region41
    $region40: #{tpu_custom_call.1} parent=1 // pred_region
      %1522 = dma.done [#allocation5], 128
    $region41: #{tpu_custom_call.1} parent=1 // pred_fallthru
      _
    %1523 = vsyncpa [#allocation4], 1
    %1524 = vsyncpa [#allocation7], 1
    %1525 = vsyncpa [#allocation5], 1

</llo_original>
